<compile_context>
chip_gen: v7x
topology: tpu7x:2x2x1
jax: 0.10.0
libtpu: 0.0.40
codegen_flags: <defaults>
</compile_context>

<pallas_src>
import functools

import jax
import jax.numpy as jnp
import numpy as np
from jax.experimental import pallas as pl
from jax.experimental.pallas import tpu as pltpu

LANE = 128  # TPU lane width; all feature-like dims are padded to this.


# ----------------------------- Pallas kernel ------------------------------- #

def _gcn_fused_kernel(x_ref, a_ref, p_ref, w_ref, b_ref, wlin_ref, o_ref):
    """Fused GCN forward for ONE graph-batch (one grid step).

    x_ref    : [N_pad, 128]          zero-padded node features
    a_ref    : [N_pad, N_pad]        dense adjacency (target, source), zero-padded
    p_ref    : [G_pad, N_pad]        mean-pool matrix (zero rows/cols beyond G/N)
    w_ref    : [3, 2, 128, 128]      conv weights [layer, {nbr, root}, in, out]
    b_ref    : [8, 128]              rows 0..2 = conv biases, row 3 = head bias
    wlin_ref : [128, 128]            zero-padded head weight
    o_ref    : [G_pad, 128]          lane-dense output (slice [:G, :C] outside)
    """
    a = a_ref[...]          # loaded once, reused by all three conv layers
    b_all = b_ref[...]      # [8, 128], one vreg

    def conv(h, layer, relu):
        agg = jnp.dot(a, h, preferred_element_type=jnp.float32)          # [N, 128]
        out = (jnp.dot(agg, w_ref[layer, 0, :, :],
                       preferred_element_type=jnp.float32)
               + jnp.dot(h, w_ref[layer, 1, :, :],
                         preferred_element_type=jnp.float32)
               + b_all[layer:layer + 1, :])
        return jnp.maximum(out, 0.0) if relu else out

    h = x_ref[...]
    h = conv(h, 0, relu=True)
    h = conv(h, 1, relu=True)
    h = conv(h, 2, relu=False)

    pooled = jnp.dot(p_ref[...], h, preferred_element_type=jnp.float32)  # [G, 128]
    o_ref[...] = (jnp.dot(pooled, wlin_ref[...],
                          preferred_element_type=jnp.float32)
                  + b_all[3:4, :])


# --------------------------- packing / wrapper ------------------------------ #

def _pad_to(arr, shape):
    pads = [(0, s - d) for d, s in zip(arr.shape, shape)]
    return jnp.pad(arr, pads)


def pack_params(params):
    """One-time padding / stacking of weights into 2 fused, lane-dense arrays."""
    def pad_w(w):
        return _pad_to(w, (LANE, LANE))

    def pad_b(b):
        b = b.reshape(-1)
        return jnp.pad(b, (0, LANE - b.shape[0]))

    w = jnp.stack([
        jnp.stack([pad_w(params["w1_nbr"]), pad_w(params["w1_root"])]),
        jnp.stack([pad_w(params["w2_nbr"]), pad_w(params["w2_root"])]),
        jnp.stack([pad_w(params["w3_nbr"]), pad_w(params["w3_root"])]),
    ])                                                   # [3, 2, 128, 128]

    zeros = jnp.zeros((LANE,), jnp.float32)
    b = jnp.stack([pad_b(params["b1"]), pad_b(params["b2"]),
                   pad_b(params["b3"]), pad_b(params["b_lin"]),
                   zeros, zeros, zeros, zeros])          # [8, 128]

    return {"w": w, "b": b, "wlin": _pad_to(params["w_lin"], (LANE, LANE))}


@functools.partial(jax.jit, static_argnames=("num_classes",))
def gcn_forward(packed, x, a, p, *, num_classes):
    """x: [B, N, F], a: [B, N, N], p: [B, G, N]  ->  [B, G, num_classes]."""
    bsz, n, f = x.shape
    g = p.shape[1]
    assert f <= LANE and num_classes <= LANE

    n_pad = -(-n // LANE) * LANE      # lane-dense A / K dim
    g_pad = -(-g // 8) * 8            # full sublane group for the pooled dim

    x_p = jnp.pad(x, ((0, 0), (0, n_pad - n), (0, LANE - f)))
    a_p = jnp.pad(a, ((0, 0), (0, n_pad - n), (0, n_pad - n)))
    p_p = jnp.pad(p, ((0, 0), (0, g_pad - g), (0, n_pad - n)))

    out_p = pl.pallas_call(
        _gcn_fused_kernel,
        out_shape=jax.ShapeDtypeStruct((bsz, g_pad, LANE), jnp.float32),
        grid=(bsz,),
        in_specs=[
            pl.BlockSpec((None, n_pad, LANE), lambda b: (b, 0, 0)),
            pl.BlockSpec((None, n_pad, n_pad), lambda b: (b, 0, 0)),
            pl.BlockSpec((None, g_pad, n_pad), lambda b: (b, 0, 0)),
            pl.BlockSpec((3, 2, LANE, LANE), lambda b: (0, 0, 0, 0)),
            pl.BlockSpec((8, LANE), lambda b: (0, 0)),
            pl.BlockSpec((LANE, LANE), lambda b: (0, 0)),
        ],
        out_specs=pl.BlockSpec((None, g_pad, LANE), lambda b: (b, 0, 0)),
        compiler_params=pltpu.CompilerParams(
            dimension_semantics=("parallel",)),
    )(x_p, a_p, p_p, packed["w"], packed["b"], packed["wlin"])

    return out_p[:, :g, :num_classes]


# ------------------------------ init / reference ---------------------------- #

def init_params(key, num_features, hidden, num_classes):
    ks = jax.random.split(key, 8)

    def lin(k, fan_in, fan_out):
        bound = 1.0 / np.sqrt(fan_in)
        return jax.random.uniform(k, (fan_in, fan_out), jnp.float32, -bound, bound)

    return {
        "w1_nbr": lin(ks[0], num_features, hidden),
        "w1_root": lin(ks[1], num_features, hidden),
        "b1": jnp.zeros((1, hidden), jnp.float32),
        "w2_nbr": lin(ks[2], hidden, hidden),
        "w2_root": lin(ks[3], hidden, hidden),
        "b2": jnp.full((1, hidden), 0.01, jnp.float32),
        "w3_nbr": lin(ks[4], hidden, hidden),
        "w3_root": lin(ks[5], hidden, hidden),
        "b3": jnp.full((1, hidden), -0.01, jnp.float32),
        "w_lin": lin(ks[6], hidden, num_classes),
        "b_lin": jax.random.uniform(ks[7], (1, num_classes), jnp.float32, -0.1, 0.1),
    }


def reference_forward(params, x, a, p):
    """Pure-JAX reference, batched over the leading graph-batch dim."""
    def conv(h, wn, wr, b, relu):
        out = jnp.einsum("bij,bjf->bif", a, h) @ wn + h @ wr + b
        return jnp.maximum(out, 0.0) if relu else out

    h = conv(x, params["w1_nbr"], params["w1_root"], params["b1"], True)
    h = conv(h, params["w2_nbr"], params["w2_root"], params["b2"], True)
    h = conv(h, params["w3_nbr"], params["w3_root"], params["b3"], False)
    pooled = jnp.einsum("bgn,bnf->bgf", p, h)
    return pooled @ params["w_lin"] + params["b_lin"]


# ---------------------------------- main ------------------------------------ #

if __name__ == "__main__":
    key = jax.random.PRNGKey(0)

    BATCHES = 8                            # graph-batches per kernel call (grid)
    NUM_GRAPHS = 4                         # graphs per batch
    NODES_PER_GRAPH = 8
    N = NUM_GRAPHS * NODES_PER_GRAPH       # 32 nodes per batch
    NUM_FEATURES = 8                       # dataset.num_features
    HIDDEN = 32                            # hidden_channels
    NUM_CLASSES = 4                        # dataset.num_classes

    k_x, k_p = jax.random.split(key, 2)

    # Node features [B, N, F].
    x = jax.random.normal(k_x, (BATCHES, N, NUM_FEATURES), jnp.float32)

    # batch vector within each graph-batch: nodes 0..7 -> graph 0, etc.
    batch_vec = np.repeat(np.arange(NUM_GRAPHS), NODES_PER_GRAPH)

    # Deterministic edge_index per graph-batch: ring within each graph plus a
    # few random intra-graph edges.  Dense adjacency A[b, target, source].
    rng = np.random.RandomState(0)
    A = np.zeros((BATCHES, N, N), np.float32)
    for bi in range(BATCHES):
        for g in range(NUM_GRAPHS):
            base = g * NODES_PER_GRAPH
            for i in range(NODES_PER_GRAPH):
                src = base + i
                dst = base + (i + 1) % NODES_PER_GRAPH
                A[bi, dst, src] = 1.0
                A[bi, src, dst] = 1.0
            for _ in range(6):
                s, d = rng.randint(0, NODES_PER_GRAPH, size=2)
                if s != d:
                    A[bi, base + d, base + s] = 1.0
    a = jnp.asarray(A)

    # Mean-pool matrix P [B, G, N] (same node->graph assignment each batch).
    P = np.zeros((BATCHES, NUM_GRAPHS, N), np.float32)
    for n in range(N):
        P[:, batch_vec[n], n] = 1.0 / NODES_PER_GRAPH
    p = jnp.asarray(P)

    params = init_params(k_p, NUM_FEATURES, HIDDEN, NUM_CLASSES)
    packed = pack_params(params)

    out = gcn_forward(packed, x, a, p, num_classes=NUM_CLASSES)
    out = jax.block_until_ready(out)

    ref = reference_forward(params, x, a, p)
    np.testing.assert_allclose(np.asarray(out), np.asarray(ref),
                               rtol=1e-4, atol=1e-4)

    assert out.shape == (BATCHES, NUM_GRAPHS, NUM_CLASSES)
    print("KERNEL_OK")
</pallas_src>

<mosaic_0001>
module attributes {stable_mosaic.version = 11 : i64} {
  func.func @_gcn_fused_kernel(%arg0: i32, %arg1: memref<1x128x128xf32, #tpu.memory_space<vmem>>, %arg2: memref<1x128x128xf32, #tpu.memory_space<vmem>>, %arg3: memref<1x8x128xf32, #tpu.memory_space<vmem>>, %arg4: memref<3x2x128x128xf32, #tpu.memory_space<vmem>>, %arg5: memref<8x128xf32, #tpu.memory_space<vmem>>, %arg6: memref<128x128xf32, #tpu.memory_space<vmem>>, %arg7: memref<1x8x128xf32, #tpu.memory_space<vmem>>) attributes {dimension_semantics = [#tpu.dimension_semantics<parallel>], iteration_bounds = array<i64: 8>, scalar_prefetch = 0 : i64, scratch_operands = 0 : i64, tpu.core_type = #tpu.core_type<tc>, window_params = [{transform_indices = @transform_0, window_bounds = array<i64: 1, 128, 128>}, {transform_indices = @transform_1, window_bounds = array<i64: 1, 128, 128>}, {transform_indices = @transform_2, window_bounds = array<i64: 1, 8, 128>}, {pipeline_mode = #tpu.pipeline_mode<synchronous>, transform_indices = @transform_3, window_bounds = array<i64: 3, 2, 128, 128>}, {pipeline_mode = #tpu.pipeline_mode<synchronous>, transform_indices = @transform_4, window_bounds = array<i64: 8, 128>}, {pipeline_mode = #tpu.pipeline_mode<synchronous>, transform_indices = @transform_5, window_bounds = array<i64: 128, 128>}, {transform_indices = @transform_6, window_bounds = array<i64: 1, 8, 128>}]} {
    %c0 = arith.constant 0 : index
    %c0_0 = arith.constant 0 : index
    %c0_1 = arith.constant 0 : index
    %0 = vector.load %arg2[%c0, %c0_0, %c0_1] : memref<1x128x128xf32, #tpu.memory_space<vmem>>, vector<1x128x128xf32>
    %1 = vector.shape_cast %0 : vector<1x128x128xf32> to vector<128x128xf32>
    %c0_2 = arith.constant 0 : index
    %c0_3 = arith.constant 0 : index
    %2 = vector.load %arg5[%c0_2, %c0_3] : memref<8x128xf32, #tpu.memory_space<vmem>>, vector<8x128xf32>
    %c0_4 = arith.constant 0 : index
    %c0_5 = arith.constant 0 : index
    %c0_6 = arith.constant 0 : index
    %3 = vector.load %arg1[%c0_4, %c0_5, %c0_6] : memref<1x128x128xf32, #tpu.memory_space<vmem>>, vector<1x128x128xf32>
    %4 = vector.shape_cast %3 : vector<1x128x128xf32> to vector<128x128xf32>
    %cst = arith.constant dense<0.000000e+00> : vector<128x128xf32>
    %5 = tpu.matmul %1, %4, %cst {dimension_numbers = #tpu.dot_dimension_numbers<[1], [0], [0], [1], [0, 0, 1, 1], [], []>} : vector<128x128xf32>, vector<128x128xf32>, vector<128x128xf32> -> vector<128x128xf32>
    %c0_7 = arith.constant 0 : index
    %c0_8 = arith.constant 0 : index
    %c0_9 = arith.constant 0 : index
    %c0_10 = arith.constant 0 : index
    %6 = vector.load %arg4[%c0_7, %c0_8, %c0_9, %c0_10] : memref<3x2x128x128xf32, #tpu.memory_space<vmem>>, vector<1x1x128x128xf32>
    %7 = vector.shape_cast %6 : vector<1x1x128x128xf32> to vector<128x128xf32>
    %cst_11 = arith.constant dense<0.000000e+00> : vector<128x128xf32>
    %8 = tpu.matmul %5, %7, %cst_11 {dimension_numbers = #tpu.dot_dimension_numbers<[1], [0], [0], [1], [0, 0, 1, 1], [], []>} : vector<128x128xf32>, vector<128x128xf32>, vector<128x128xf32> -> vector<128x128xf32>
    %c0_12 = arith.constant 0 : index
    %c1 = arith.constant 1 : index
    %c0_13 = arith.constant 0 : index
    %c0_14 = arith.constant 0 : index
    %9 = vector.load %arg4[%c0_12, %c1, %c0_13, %c0_14] : memref<3x2x128x128xf32, #tpu.memory_space<vmem>>, vector<1x1x128x128xf32>
    %10 = vector.shape_cast %9 : vector<1x1x128x128xf32> to vector<128x128xf32>
    %cst_15 = arith.constant dense<0.000000e+00> : vector<128x128xf32>
    %11 = tpu.matmul %4, %10, %cst_15 {dimension_numbers = #tpu.dot_dimension_numbers<[1], [0], [0], [1], [0, 0, 1, 1], [], []>} : vector<128x128xf32>, vector<128x128xf32>, vector<128x128xf32> -> vector<128x128xf32>
    %12 = arith.addf %8, %11 : vector<128x128xf32>
    %13 = vector.extract_strided_slice %2 {offsets = [0, 0], sizes = [1, 128], strides = [1, 1]} : vector<8x128xf32> to vector<1x128xf32>
    %14 = vector.broadcast %13 : vector<1x128xf32> to vector<128x128xf32>
    %15 = arith.addf %12, %14 : vector<128x128xf32>
    %cst_16 = arith.constant 0.000000e+00 : f32
    %16 = vector.broadcast %cst_16 : f32 to vector<128x128xf32>
    %17 = arith.maximumf %15, %16 : vector<128x128xf32>
    %cst_17 = arith.constant dense<0.000000e+00> : vector<128x128xf32>
    %18 = tpu.matmul %1, %17, %cst_17 {dimension_numbers = #tpu.dot_dimension_numbers<[1], [0], [0], [1], [0, 0, 1, 1], [], []>} : vector<128x128xf32>, vector<128x128xf32>, vector<128x128xf32> -> vector<128x128xf32>
    %c1_18 = arith.constant 1 : index
    %c0_19 = arith.constant 0 : index
    %c0_20 = arith.constant 0 : index
    %c0_21 = arith.constant 0 : index
    %19 = vector.load %arg4[%c1_18, %c0_19, %c0_20, %c0_21] : memref<3x2x128x128xf32, #tpu.memory_space<vmem>>, vector<1x1x128x128xf32>
    %20 = vector.shape_cast %19 : vector<1x1x128x128xf32> to vector<128x128xf32>
    %cst_22 = arith.constant dense<0.000000e+00> : vector<128x128xf32>
    %21 = tpu.matmul %18, %20, %cst_22 {dimension_numbers = #tpu.dot_dimension_numbers<[1], [0], [0], [1], [0, 0, 1, 1], [], []>} : vector<128x128xf32>, vector<128x128xf32>, vector<128x128xf32> -> vector<128x128xf32>
    %c1_23 = arith.constant 1 : index
    %c1_24 = arith.constant 1 : index
    %c0_25 = arith.constant 0 : index
    %c0_26 = arith.constant 0 : index
    %22 = vector.load %arg4[%c1_23, %c1_24, %c0_25, %c0_26] : memref<3x2x128x128xf32, #tpu.memory_space<vmem>>, vector<1x1x128x128xf32>
    %23 = vector.shape_cast %22 : vector<1x1x128x128xf32> to vector<128x128xf32>
    %cst_27 = arith.constant dense<0.000000e+00> : vector<128x128xf32>
    %24 = tpu.matmul %17, %23, %cst_27 {dimension_numbers = #tpu.dot_dimension_numbers<[1], [0], [0], [1], [0, 0, 1, 1], [], []>} : vector<128x128xf32>, vector<128x128xf32>, vector<128x128xf32> -> vector<128x128xf32>
    %25 = arith.addf %21, %24 : vector<128x128xf32>
    %26 = vector.extract_strided_slice %2 {offsets = [1, 0], sizes = [1, 128], strides = [1, 1]} : vector<8x128xf32> to vector<1x128xf32>
    %27 = vector.broadcast %26 : vector<1x128xf32> to vector<128x128xf32>
    %28 = arith.addf %25, %27 : vector<128x128xf32>
    %cst_28 = arith.constant 0.000000e+00 : f32
    %29 = vector.broadcast %cst_28 : f32 to vector<128x128xf32>
    %30 = arith.maximumf %28, %29 : vector<128x128xf32>
    %cst_29 = arith.constant dense<0.000000e+00> : vector<128x128xf32>
    %31 = tpu.matmul %1, %30, %cst_29 {dimension_numbers = #tpu.dot_dimension_numbers<[1], [0], [0], [1], [0, 0, 1, 1], [], []>} : vector<128x128xf32>, vector<128x128xf32>, vector<128x128xf32> -> vector<128x128xf32>
    %c2 = arith.constant 2 : index
    %c0_30 = arith.constant 0 : index
    %c0_31 = arith.constant 0 : index
    %c0_32 = arith.constant 0 : index
    %32 = vector.load %arg4[%c2, %c0_30, %c0_31, %c0_32] : memref<3x2x128x128xf32, #tpu.memory_space<vmem>>, vector<1x1x128x128xf32>
    %33 = vector.shape_cast %32 : vector<1x1x128x128xf32> to vector<128x128xf32>
    %cst_33 = arith.constant dense<0.000000e+00> : vector<128x128xf32>
    %34 = tpu.matmul %31, %33, %cst_33 {dimension_numbers = #tpu.dot_dimension_numbers<[1], [0], [0], [1], [0, 0, 1, 1], [], []>} : vector<128x128xf32>, vector<128x128xf32>, vector<128x128xf32> -> vector<128x128xf32>
    %c2_34 = arith.constant 2 : index
    %c1_35 = arith.constant 1 : index
    %c0_36 = arith.constant 0 : index
    %c0_37 = arith.constant 0 : index
    %35 = vector.load %arg4[%c2_34, %c1_35, %c0_36, %c0_37] : memref<3x2x128x128xf32, #tpu.memory_space<vmem>>, vector<1x1x128x128xf32>
    %36 = vector.shape_cast %35 : vector<1x1x128x128xf32> to vector<128x128xf32>
    %cst_38 = arith.constant dense<0.000000e+00> : vector<128x128xf32>
    %37 = tpu.matmul %30, %36, %cst_38 {dimension_numbers = #tpu.dot_dimension_numbers<[1], [0], [0], [1], [0, 0, 1, 1], [], []>} : vector<128x128xf32>, vector<128x128xf32>, vector<128x128xf32> -> vector<128x128xf32>
    %38 = arith.addf %34, %37 : vector<128x128xf32>
    %39 = vector.extract_strided_slice %2 {offsets = [2, 0], sizes = [1, 128], strides = [1, 1]} : vector<8x128xf32> to vector<1x128xf32>
    %40 = vector.broadcast %39 : vector<1x128xf32> to vector<128x128xf32>
    %41 = arith.addf %38, %40 : vector<128x128xf32>
    %c0_39 = arith.constant 0 : index
    %c0_40 = arith.constant 0 : index
    %c0_41 = arith.constant 0 : index
    %42 = vector.load %arg3[%c0_39, %c0_40, %c0_41] : memref<1x8x128xf32, #tpu.memory_space<vmem>>, vector<1x8x128xf32>
    %43 = vector.shape_cast %42 : vector<1x8x128xf32> to vector<8x128xf32>
    %cst_42 = arith.constant dense<0.000000e+00> : vector<8x128xf32>
    %44 = tpu.matmul %43, %41, %cst_42 {dimension_numbers = #tpu.dot_dimension_numbers<[1], [0], [0], [1], [0, 0, 1, 1], [], []>} : vector<8x128xf32>, vector<128x128xf32>, vector<8x128xf32> -> vector<8x128xf32>
    %c0_43 = arith.constant 0 : index
    %c0_44 = arith.constant 0 : index
    %45 = vector.load %arg6[%c0_43, %c0_44] : memref<128x128xf32, #tpu.memory_space<vmem>>, vector<128x128xf32>
    %cst_45 = arith.constant dense<0.000000e+00> : vector<8x128xf32>
    %46 = tpu.matmul %44, %45, %cst_45 {dimension_numbers = #tpu.dot_dimension_numbers<[1], [0], [0], [1], [0, 0, 1, 1], [], []>} : vector<8x128xf32>, vector<128x128xf32>, vector<8x128xf32> -> vector<8x128xf32>
    %47 = vector.extract_strided_slice %2 {offsets = [3, 0], sizes = [1, 128], strides = [1, 1]} : vector<8x128xf32> to vector<1x128xf32>
    %48 = vector.broadcast %47 : vector<1x128xf32> to vector<8x128xf32>
    %49 = arith.addf %46, %48 : vector<8x128xf32>
    %c0_46 = arith.constant 0 : index
    %c0_47 = arith.constant 0 : index
    %c0_48 = arith.constant 0 : index
    %50 = vector.load %arg7[%c0_46, %c0_47, %c0_48] : memref<1x8x128xf32, #tpu.memory_space<vmem>>, vector<1x8x128xf32>
    %51 = vector.shape_cast %50 : vector<1x8x128xf32> to vector<8x128xf32>
    %52 = vector.shape_cast %49 : vector<8x128xf32> to vector<1x8x128xf32>
    tpu.vector_store %arg7[%c0_46, %c0_47, %c0_48], %52 {strides = array<i32>} : memref<1x8x128xf32, #tpu.memory_space<vmem>>, vector<1x8x128xf32>,
    return
  }
  func.func @transform_0(%arg0: i32) -> (i32, i32, i32) {
    %c0_i32 = arith.constant 0 : i32
    %c0_i32_0 = arith.constant 0 : i32
    %c0_i32_1 = arith.constant 0 : i32
    return %arg0, %c0_i32, %c0_i32_0 : i32, i32, i32
  }
  func.func @transform_1(%arg0: i32) -> (i32, i32, i32) {
    %c0_i32 = arith.constant 0 : i32
    %c0_i32_0 = arith.constant 0 : i32
    %c0_i32_1 = arith.constant 0 : i32
    return %arg0, %c0_i32, %c0_i32_0 : i32, i32, i32
  }
  func.func @transform_2(%arg0: i32) -> (i32, i32, i32) {
    %c0_i32 = arith.constant 0 : i32
    %c0_i32_0 = arith.constant 0 : i32
    %c0_i32_1 = arith.constant 0 : i32
    return %arg0, %c0_i32, %c0_i32_0 : i32, i32, i32
  }
  func.func @transform_3(%arg0: i32) -> (i32, i32, i32, i32) {
    %c0_i32 = arith.constant 0 : i32
    %c0_i32_0 = arith.constant 0 : i32
    %c0_i32_1 = arith.constant 0 : i32
    %c0_i32_2 = arith.constant 0 : i32
    %c0_i32_3 = arith.constant 0 : i32
    return %c0_i32, %c0_i32_0, %c0_i32_1, %c0_i32_2 : i32, i32, i32, i32
  }
  func.func @transform_4(%arg0: i32) -> (i32, i32) {
    %c0_i32 = arith.constant 0 : i32
    %c0_i32_0 = arith.constant 0 : i32
    %c0_i32_1 = arith.constant 0 : i32
    return %c0_i32, %c0_i32_0 : i32, i32
  }
  func.func @transform_5(%arg0: i32) -> (i32, i32) {
    %c0_i32 = arith.constant 0 : i32
    %c0_i32_0 = arith.constant 0 : i32
    %c0_i32_1 = arith.constant 0 : i32
    return %c0_i32, %c0_i32_0 : i32, i32
  }
  func.func @transform_6(%arg0: i32) -> (i32, i32, i32) {
    %c0_i32 = arith.constant 0 : i32
    %c0_i32_0 = arith.constant 0 : i32
    %c0_i32_1 = arith.constant 0 : i32
    return %arg0, %c0_i32, %c0_i32_0 : i32, i32, i32
  }
}

</mosaic_0001>

<llo_original>
// kernel: gcn_forward.1
$region0: #{gcn_forward.1}
  #allocation0 [shape = 'u32[]', space=smem, size = 0x4, offset = 0x4, fixed_abs, tag = 'smem constant byte address 0x4 - core index']
  #allocation1 [shape = 'u32[144,128]{1,0:T(1,128)}', space=vmem, size = 0x12000, scoped, tag = 'internal scratch']
  %s0 = inlined_call_operand.vmem [shape: f32[8,128,128], index: 0, kind: input, shape index: {}]
  %s1 = inlined_call_operand.vmem [shape: f32[8,128,128], index: 1, kind: input, shape index: {}]
  %s2 = inlined_call_operand.vmem [shape: f32[8,8,128], index: 2, kind: input, shape index: {}]
  %s3 = inlined_call_operand.vmem [shape: f32[3,2,128,128], index: 3, kind: input, shape index: {}]
  %s4 = inlined_call_operand.vmem [shape: f32[8,128], index: 4, kind: input, shape index: {}]
  %s5 = inlined_call_operand.vmem [shape: f32[128,128], index: 5, kind: input, shape index: {}]
  %s6 = inlined_call_operand.vmem [shape: f32[8,8,128], index: 6, kind: output, shape index: {}]
  %s7 = sld [smem:[#allocation0]]
  $region57: #{gcn_forward.1} parent=0
    _
  %s9 = ssub.s32 1, %s7
  %s10 = scalar_select 0, %s9, %s7
  loop: start=0, step=1, limit=10
  $region2: #{gcn_forward.1} parent=0 // loop_pre_header
    _
  $region3: #{gcn_forward.1} parent=0 // loop_header
    %s12 = sphi 0, %s16
    %p13 = scmp.ge.s32.totalorder %s12, 10
    %s22 = sphi 0, %s24
    %s25 = sphi 0, %s22
    %s26 = sphi 0, %s25
    %s42 = sphi 0, %s26
    %s48 = sphi 0, %s50
    %s51 = sphi 0, %s48
    %s52 = sphi 0, %s51
    %s68 = sphi 0, %s52
    %s74 = sphi 0, %s76
    %s77 = sphi 0, %s74
    %s78 = sphi 0, %s77
    %s94 = sphi 0, %s78
    %s98 = sphi 0, %s98
    %s100 = sphi 0, %s98
    %s101 = sphi 0, %s100
    %s115 = sphi 0, %s101
    %s119 = sphi 0, %s119
    %s121 = sphi 0, %s119
    %s122 = sphi 0, %s121
    %s136 = sphi 0, %s122
    %s140 = sphi 0, %s140
    %s142 = sphi 0, %s140
    %s143 = sphi 0, %s142
    %s157 = sphi 0, %s143
    %s163 = sphi 0, %s165
    %s166 = sphi 0, %s163
    %s167 = sphi 0, %s166
    %s183 = sphi 0, %s167
  $region4: #{gcn_forward.1} parent=0 // loop_header_branch
    %15 = sbr.rel (%p13) target = $region8
  $region5: #{gcn_forward.1} parent=0 // loop_body
    %s17 = ssub.s32 %s12, 1
    %s18 = ssub.s32 %s12, 2
    %s19 = sadd.s32 %s12, 1
    %s20 = ssub.s32 %s12, %s19
    %p21 = scmp.eq.s32.totalorder %s20, 0
    %s23 = sadd.s32 %s22, 1
    %s24 = scalar_select %p21, %s22, %s23
    %p27 = pneg %p21
    %p28 = scmp.eq.s32.totalorder %s12, 7
    %p29 = por %p27, %p28
    %p30 = scmp.ne.s32.totalorder %s22, %s25
    %p31 = scmp.eq.s32.totalorder %s12, 0
    %p32 = por %p30, %p31
    %p33 = scmp.ne.s32.totalorder %s22, %s25
    %p34 = scmp.eq.s32.totalorder %s17, 7
    %p35 = por %p33, %p34
    %p36 = scmp.ne.s32.totalorder %s25, %s26
    %p37 = scmp.eq.s32.totalorder %s17, 0
    %p38 = por %p36, %p37
    %p39 = scmp.ne.s32.totalorder %s25, %s26
    %p40 = scmp.eq.s32.totalorder %s18, 7
    %p41 = por %p39, %p40
    %p43 = scmp.ne.s32.totalorder %s26, %s42
    %p44 = scmp.eq.s32.totalorder %s18, 0
    %p45 = por %p43, %p44
    %s46 = ssub.s32 %s12, %s19
    %p47 = scmp.eq.s32.totalorder %s46, 0
    %s49 = sadd.s32 %s48, 1
    %s50 = scalar_select %p47, %s48, %s49
    %p53 = pneg %p47
    %p54 = scmp.eq.s32.totalorder %s12, 7
    %p55 = por %p53, %p54
    %p56 = scmp.ne.s32.totalorder %s48, %s51
    %p57 = scmp.eq.s32.totalorder %s12, 0
    %p58 = por %p56, %p57
    %p59 = scmp.ne.s32.totalorder %s48, %s51
    %p60 = scmp.eq.s32.totalorder %s17, 7
    %p61 = por %p59, %p60
    %p62 = scmp.ne.s32.totalorder %s51, %s52
    %p63 = scmp.eq.s32.totalorder %s17, 0
    %p64 = por %p62, %p63
    %p65 = scmp.ne.s32.totalorder %s51, %s52
    %p66 = scmp.eq.s32.totalorder %s18, 7
    %p67 = por %p65, %p66
    %p69 = scmp.ne.s32.totalorder %s52, %s68
    %p70 = scmp.eq.s32.totalorder %s18, 0
    %p71 = por %p69, %p70
    %s72 = ssub.s32 %s12, %s19
    %p73 = scmp.eq.s32.totalorder %s72, 0
    %s75 = sadd.s32 %s74, 1
    %s76 = scalar_select %p73, %s74, %s75
    %p79 = pneg %p73
    %p80 = scmp.eq.s32.totalorder %s12, 7
    %p81 = por %p79, %p80
    %p82 = scmp.ne.s32.totalorder %s74, %s77
    %p83 = scmp.eq.s32.totalorder %s12, 0
    %p84 = por %p82, %p83
    %p85 = scmp.ne.s32.totalorder %s74, %s77
    %p86 = scmp.eq.s32.totalorder %s17, 7
    %p87 = por %p85, %p86
    %p88 = scmp.ne.s32.totalorder %s77, %s78
    %p89 = scmp.eq.s32.totalorder %s17, 0
    %p90 = por %p88, %p89
    %p91 = scmp.ne.s32.totalorder %s77, %s78
    %p92 = scmp.eq.s32.totalorder %s18, 7
    %p93 = por %p91, %p92
    %p95 = scmp.ne.s32.totalorder %s78, %s94
    %p96 = scmp.eq.s32.totalorder %s18, 0
    %p97 = por %p95, %p96
    %s99 = sadd.s32 %s98, 1
    %p102 = scmp.eq.s32.totalorder %s12, 7
    %p103 = scmp.ne.s32.totalorder %s98, %s100
    %p104 = scmp.eq.s32.totalorder %s12, 0
    %p105 = por %p103, %p104
    %p106 = scmp.ne.s32.totalorder %s98, %s100
    %p107 = scmp.eq.s32.totalorder %s17, 7
    %p108 = por %p106, %p107
    %p109 = scmp.ne.s32.totalorder %s100, %s101
    %p110 = scmp.eq.s32.totalorder %s17, 0
    %p111 = por %p109, %p110
    %p112 = scmp.ne.s32.totalorder %s100, %s101
    %p113 = scmp.eq.s32.totalorder %s18, 7
    %p114 = por %p112, %p113
    %p116 = scmp.ne.s32.totalorder %s101, %s115
    %p117 = scmp.eq.s32.totalorder %s18, 0
    %p118 = por %p116, %p117
    %s120 = sadd.s32 %s119, 1
    %p123 = scmp.eq.s32.totalorder %s12, 7
    %p124 = scmp.ne.s32.totalorder %s119, %s121
    %p125 = scmp.eq.s32.totalorder %s12, 0
    %p126 = por %p124, %p125
    %p127 = scmp.ne.s32.totalorder %s119, %s121
    %p128 = scmp.eq.s32.totalorder %s17, 7
    %p129 = por %p127, %p128
    %p130 = scmp.ne.s32.totalorder %s121, %s122
    %p131 = scmp.eq.s32.totalorder %s17, 0
    %p132 = por %p130, %p131
    %p133 = scmp.ne.s32.totalorder %s121, %s122
    %p134 = scmp.eq.s32.totalorder %s18, 7
    %p135 = por %p133, %p134
    %p137 = scmp.ne.s32.totalorder %s122, %s136
    %p138 = scmp.eq.s32.totalorder %s18, 0
    %p139 = por %p137, %p138
    %s141 = sadd.s32 %s140, 1
    %p144 = scmp.eq.s32.totalorder %s12, 7
    %p145 = scmp.ne.s32.totalorder %s140, %s142
    %p146 = scmp.eq.s32.totalorder %s12, 0
    %p147 = por %p145, %p146
    %p148 = scmp.ne.s32.totalorder %s140, %s142
    %p149 = scmp.eq.s32.totalorder %s17, 7
    %p150 = por %p148, %p149
    %p151 = scmp.ne.s32.totalorder %s142, %s143
    %p152 = scmp.eq.s32.totalorder %s17, 0
    %p153 = por %p151, %p152
    %p154 = scmp.ne.s32.totalorder %s142, %s143
    %p155 = scmp.eq.s32.totalorder %s18, 7
    %p156 = por %p154, %p155
    %p158 = scmp.ne.s32.totalorder %s143, %s157
    %p159 = scmp.eq.s32.totalorder %s18, 0
    %p160 = por %p158, %p159
    %s161 = ssub.s32 %s12, %s19
    %p162 = scmp.eq.s32.totalorder %s161, 0
    %s164 = sadd.s32 %s163, 1
    %s165 = scalar_select %p162, %s163, %s164
    %p168 = pneg %p162
    %p169 = scmp.eq.s32.totalorder %s12, 7
    %p170 = por %p168, %p169
    %p171 = scmp.ne.s32.totalorder %s163, %s166
    %p172 = scmp.eq.s32.totalorder %s12, 0
    %p173 = por %p171, %p172
    %p174 = scmp.ne.s32.totalorder %s163, %s166
    %p175 = scmp.eq.s32.totalorder %s17, 7
    %p176 = por %p174, %p175
    %p177 = scmp.ne.s32.totalorder %s166, %s167
    %p178 = scmp.eq.s32.totalorder %s17, 0
    %p179 = por %p177, %p178
    %p180 = scmp.ne.s32.totalorder %s166, %s167
    %p181 = scmp.eq.s32.totalorder %s18, 7
    %p182 = por %p180, %p181
    %p184 = scmp.ne.s32.totalorder %s167, %s183
    %p185 = scmp.eq.s32.totalorder %s18, 0
    %p186 = por %p184, %p185
    %p187 = scmp.le.s32.totalorder 1, %s12
    %p188 = scmp.lt.s32.totalorder %s12, 9
    %p189 = pnand %p187, %p188
    %p190 = pneg %p189
    // Predicated region
    $region9: #{gcn_forward.1} parent=5 // pred_check
      _
    $region10: #{gcn_forward.1} parent=5 // pred_check_branch
      %192 = sbr.rel (%p189) target = $region12
    $region11: #{gcn_forward.1} parent=5 // pred_region
      %s193 = ssub.s32 %s12, 1
      // Predicated region
      $region13: #{gcn_forward.1} parent=11 // pred_check
        %p194 = pneg %p111
      $region14: #{gcn_forward.1} parent=11 // pred_check_branch
        %196 = sbr.rel (%p194) target = $region16
      $region15: #{gcn_forward.1} parent=11 // pred_region
        _
      $region16: #{gcn_forward.1} parent=11 // pred_fallthru
        _
      // Predicated region
      $region17: #{gcn_forward.1} parent=11 // pred_check
        %p197 = pneg %p132
      $region18: #{gcn_forward.1} parent=11 // pred_check_branch
        %199 = sbr.rel (%p197) target = $region20
      $region19: #{gcn_forward.1} parent=11 // pred_region
        _
      $region20: #{gcn_forward.1} parent=11 // pred_fallthru
        _
      // Predicated region
      $region21: #{gcn_forward.1} parent=11 // pred_check
        %p200 = pneg %p153
      $region22: #{gcn_forward.1} parent=11 // pred_check_branch
        %202 = sbr.rel (%p200) target = $region24
      $region23: #{gcn_forward.1} parent=11 // pred_region
        _
      $region24: #{gcn_forward.1} parent=11 // pred_fallthru
        _
    $region12: #{gcn_forward.1} parent=5 // pred_fallthru
      _
    %p203 = scmp.lt.s32.totalorder %s12, 8
    // Predicated region
    $region25: #{gcn_forward.1} parent=5 // pred_check
      %p204 = pneg %p203
    $region26: #{gcn_forward.1} parent=5 // pred_check_branch
      %206 = sbr.rel (%p204) target = $region28
    $region27: #{gcn_forward.1} parent=5 // pred_region
      // Predicated region
      $region29: #{gcn_forward.1} parent=27 // pred_check
        %p207 = pneg %p32
      $region30: #{gcn_forward.1} parent=27 // pred_check_branch
        %209 = sbr.rel (%p207) target = $region32
      $region31: #{gcn_forward.1} parent=27 // pred_region
        %p210 = scmp.lt.s32.totalorder %s12, 7
        %s211 = scalar_select %p210, %s12, 7
        %s212 = smul.addr %s211, 16
        %s213 = smul.addr %s212, 8
        %s214 = scalar_lea.vmem %s0, %s213
      $region32: #{gcn_forward.1} parent=27 // pred_fallthru
        _
      // Predicated region
      $region33: #{gcn_forward.1} parent=27 // pred_check
        %p215 = pneg %p58
      $region34: #{gcn_forward.1} parent=27 // pred_check_branch
        %217 = sbr.rel (%p215) target = $region36
      $region35: #{gcn_forward.1} parent=27 // pred_region
        %p218 = scmp.lt.s32.totalorder %s12, 7
        %s219 = scalar_select %p218, %s12, 7
        %s220 = smul.addr %s219, 16
        %s221 = smul.addr %s220, 8
        %s222 = scalar_lea.vmem %s1, %s221
      $region36: #{gcn_forward.1} parent=27 // pred_fallthru
        _
      // Predicated region
      $region37: #{gcn_forward.1} parent=27 // pred_check
        %p223 = pneg %p84
      $region38: #{gcn_forward.1} parent=27 // pred_check_branch
        %225 = sbr.rel (%p223) target = $region40
      $region39: #{gcn_forward.1} parent=27 // pred_region
        %p226 = scmp.lt.s32.totalorder %s12, 7
        %s227 = scalar_select %p226, %s12, 7
        %s228 = smul.addr %s227, 8
        %s229 = scalar_lea.vmem %s2, %s228
      $region40: #{gcn_forward.1} parent=27 // pred_fallthru
        _
    $region28: #{gcn_forward.1} parent=5 // pred_fallthru
      _
    %p230 = scmp.le.s32.totalorder 1, %s12
    %p231 = scmp.lt.s32.totalorder %s12, 9
    %p232 = pnand %p230, %p231
    %p233 = pneg %p232
    // Predicated region
    $region41: #{gcn_forward.1} parent=5 // pred_check
      _
    $region42: #{gcn_forward.1} parent=5 // pred_check_branch
      %235 = sbr.rel (%p232) target = $region44
    $region43: #{gcn_forward.1} parent=5 // pred_region
      %s236 = ssub.s32 %s12, 1
      %p237 = scmp.lt.s32.totalorder %s17, 7
      %s238 = scalar_select %p237, %s17, 7
      %s239 = smul.addr %s238, 16
      %s240 = smul.addr %s239, 8
      %s241 = scalar_lea.vmem %s0, %s240
      %p242 = pneg %p38
      %p243 = pneg %p35
      %p244 = scmp.lt.s32.totalorder %s17, 7
      %s245 = scalar_select %p244, %s17, 7
      %s246 = smul.addr %s245, 16
      %s247 = smul.addr %s246, 8
      %s248 = scalar_lea.vmem %s1, %s247
      %p249 = pneg %p64
      %p250 = pneg %p61
      %p251 = scmp.lt.s32.totalorder %s17, 7
      %s252 = scalar_select %p251, %s17, 7
      %s253 = smul.addr %s252, 8
      %s254 = scalar_lea.vmem %s2, %s253
      %p255 = pneg %p90
      %p256 = pneg %p87
      %p257 = pneg %p111
      %p258 = pneg %p108
      %p259 = pneg %p132
      %p260 = pneg %p129
      %p261 = pneg %p153
      %p262 = pneg %p150
      %p263 = pneg %p179
      %p264 = pneg %p176
      %p265 = scmp.lt.s32.totalorder %s17, 7
      %s266 = scalar_select %p265, %s17, 7
      %s267 = smul.addr %s266, 8
      %s268 = scalar_lea.vmem %s6, %s267
      %p269 = scmp.lt.s32.totalorder %s17, 7
      %s270 = scalar_select %p269, %s17, 7
      %s271 = smul.addr %s270, 16
      %s272 = smul.addr %s271, 8
      %s273 = scalar_lea.vmem %s0, %s272
      %p274 = scmp.lt.s32.totalorder %s17, 7
      %s275 = scalar_select %p274, %s17, 7
      %s276 = smul.addr %s275, 16
      %s277 = smul.addr %s276, 8
      %s278 = scalar_lea.vmem %s1, %s277
      %p279 = scmp.lt.s32.totalorder %s17, 7
      %s280 = scalar_select %p279, %s17, 7
      %s281 = smul.addr %s280, 8
      %s282 = scalar_lea.vmem %s2, %s281
      %p283 = scmp.lt.s32.totalorder %s17, 7
      %s284 = scalar_select %p283, %s17, 7
      %s285 = smul.addr %s284, 8
      %s286 = scalar_lea.vmem %s6, %s285
      %v287 = vld [vmem:[%s278] sm:$0xff]
      %v288 = vld [vmem:[%s278 + $0x8] sm:$0xff]
      %v289 = vld [vmem:[%s278 + $0x10] sm:$0xff]
      %v290 = vld [vmem:[%s278 + $0x18] sm:$0xff]
      %v291 = vld [vmem:[%s278 + $0x20] sm:$0xff]
      %v292 = vld [vmem:[%s278 + $0x28] sm:$0xff]
      %v293 = vld [vmem:[%s278 + $0x30] sm:$0xff]
      %v294 = vld [vmem:[%s278 + $0x38] sm:$0xff]
      %v295 = vld [vmem:[%s278 + $0x40] sm:$0xff]
      %v296 = vld [vmem:[%s278 + $0x48] sm:$0xff]
      %v297 = vld [vmem:[%s278 + $0x50] sm:$0xff]
      %v298 = vld [vmem:[%s278 + $0x58] sm:$0xff]
      %v299 = vld [vmem:[%s278 + $0x60] sm:$0xff]
      %v300 = vld [vmem:[%s278 + $0x68] sm:$0xff]
      %v301 = vld [vmem:[%s278 + $0x70] sm:$0xff]
      %v302 = vld [vmem:[%s278 + $0x78] sm:$0xff]
      %v303 = vld [vmem:[%s4] sm:$0xff]
      %v304 = vld [vmem:[%s273] sm:$0xff]
      %v305 = vld [vmem:[%s273 + $0x8] sm:$0xff]
      %v306 = vld [vmem:[%s273 + $0x10] sm:$0xff]
      %v307 = vld [vmem:[%s273 + $0x18] sm:$0xff]
      %v308 = vld [vmem:[%s273 + $0x20] sm:$0xff]
      %v309 = vld [vmem:[%s273 + $0x28] sm:$0xff]
      %v310 = vld [vmem:[%s273 + $0x30] sm:$0xff]
      %v311 = vld [vmem:[%s273 + $0x38] sm:$0xff]
      %v312 = vld [vmem:[%s273 + $0x40] sm:$0xff]
      %v313 = vld [vmem:[%s273 + $0x48] sm:$0xff]
      %v314 = vld [vmem:[%s273 + $0x50] sm:$0xff]
      %v315 = vld [vmem:[%s273 + $0x58] sm:$0xff]
      %v316 = vld [vmem:[%s273 + $0x60] sm:$0xff]
      %v317 = vld [vmem:[%s273 + $0x68] sm:$0xff]
      %v318 = vld [vmem:[%s273 + $0x70] sm:$0xff]
      %v319 = vld [vmem:[%s273 + $0x78] sm:$0xff]
      %320 = vmatprep.subr.mxu0 0.0
      %321 = vmatpush1.msra.mxu0 %v304
      %322 = vmatprep.subr.mxu0 0.0
      %323 = vmatpush1.msra.mxu0 %v305
      %324 = vmatprep.subr.mxu0 0.0
      %325 = vmatpush1.msra.mxu0 %v306
      %326 = vmatprep.subr.mxu0 0.0
      %327 = vmatpush1.msra.mxu0 %v307
      %328 = vmatprep.subr.mxu0 0.0
      %329 = vmatpush1.msra.mxu0 %v308
      %330 = vmatprep.subr.mxu0 0.0
      %331 = vmatpush1.msra.mxu0 %v309
      %332 = vmatprep.subr.mxu0 0.0
      %333 = vmatpush1.msra.mxu0 %v310
      %334 = vmatprep.subr.mxu0 0.0
      %335 = vmatpush1.msra.mxu0 %v311
      %336 = vmatprep.subr.mxu0 0.0
      %337 = vmatpush1.msra.mxu0 %v312
      %338 = vmatprep.subr.mxu0 0.0
      %339 = vmatpush1.msra.mxu0 %v313
      %340 = vmatprep.subr.mxu0 0.0
      %341 = vmatpush1.msra.mxu0 %v314
      %342 = vmatprep.subr.mxu0 0.0
      %343 = vmatpush1.msra.mxu0 %v315
      %344 = vmatprep.subr.mxu0 0.0
      %345 = vmatpush1.msra.mxu0 %v316
      %346 = vmatprep.subr.mxu0 0.0
      %347 = vmatpush1.msra.mxu0 %v317
      %348 = vmatprep.subr.mxu0 0.0
      %349 = vmatpush1.msra.mxu0 %v318
      %350 = vmatprep.subr.mxu0 0.0
      %351 = vmatpush1.msra.mxu0 %v319
      %352 = vmatprep.subr.mxu0 0.0
      %353 = vmatpush1.msra.mxu0 0.0
      %354 = vmatprep.subr.mxu0 0.0
      %355 = vmatpush1.msra.mxu0 0.0
      %356 = vmatprep.subr.mxu0 0.0
      %357 = vmatpush1.msra.mxu0 0.0
      %358 = vmatprep.subr.mxu0 0.0
      %359 = vmatpush1.msra.mxu0 0.0
      %360 = vmatprep.subr.mxu0 0.0
      %361 = vmatpush1.msra.mxu0 0.0
      %362 = vmatprep.subr.mxu0 0.0
      %363 = vmatpush1.msra.mxu0 0.0
      %364 = vmatprep.subr.mxu0 0.0
      %365 = vmatpush1.msra.mxu0 0.0
      %366 = vmatprep.subr.mxu0 0.0
      %367 = vmatpush1.msra.mxu0 0.0
      %368 = vmatprep.subr.mxu0 0.0
      %369 = vmatpush1.msra.mxu0 0.0
      %370 = vmatprep.subr.mxu0 0.0
      %371 = vmatpush1.msra.mxu0 0.0
      %372 = vmatprep.subr.mxu0 0.0
      %373 = vmatpush1.msra.mxu0 0.0
      %374 = vmatprep.subr.mxu0 0.0
      %375 = vmatpush1.msra.mxu0 0.0
      %376 = vmatprep.subr.mxu0 0.0
      %377 = vmatpush1.msra.mxu0 0.0
      %378 = vmatprep.subr.mxu0 0.0
      %379 = vmatpush1.msra.mxu0 0.0
      %380 = vmatprep.subr.mxu0 0.0
      %381 = vmatpush1.msra.mxu0 0.0
      %382 = vmatprep.subr.mxu0 0.0
      %383 = vmatpush1.msra.mxu0 0.0
      %384 = vmatprep.mubr.f32.mxu0 0.0
      %385 = vmatmul.mubr.f32.gmra.mrb[0].mxu0 %v287
      %v386 = vpop.f32.mrb[0].mxu0
      %v387 = vadd.f32 0.0, %v386
      %v388 = vpop.f32.mrb[0].mxu0
      %389 = vmatprep.mubr.f32.mxu0 0.0
      %390 = vmatmul.mubr.f32.gmra.mrb[0].mxu0 %v288
      %v391 = vpop.f32.mrb[0].mxu0
      %v392 = vadd.f32 0.0, %v391
      %v393 = vpop.f32.mrb[0].mxu0
      %394 = vmatprep.mubr.f32.mxu0 0.0
      %395 = vmatmul.mubr.f32.gmra.mrb[0].mxu0 %v289
      %v396 = vpop.f32.mrb[0].mxu0
      %v397 = vadd.f32 0.0, %v396
      %v398 = vpop.f32.mrb[0].mxu0
      %399 = vmatprep.mubr.f32.mxu0 0.0
      %400 = vmatmul.mubr.f32.gmra.mrb[0].mxu0 %v290
      %v401 = vpop.f32.mrb[0].mxu0
      %v402 = vadd.f32 0.0, %v401
      %v403 = vpop.f32.mrb[0].mxu0
      %404 = vmatprep.mubr.f32.mxu0 0.0
      %405 = vmatmul.mubr.f32.gmra.mrb[0].mxu0 %v291
      %v406 = vpop.f32.mrb[0].mxu0
      %v407 = vadd.f32 0.0, %v406
      %v408 = vpop.f32.mrb[0].mxu0
      %409 = vmatprep.mubr.f32.mxu0 0.0
      %410 = vmatmul.mubr.f32.gmra.mrb[0].mxu0 %v292
      %v411 = vpop.f32.mrb[0].mxu0
      %v412 = vadd.f32 0.0, %v411
      %v413 = vpop.f32.mrb[0].mxu0
      %414 = vmatprep.mubr.f32.mxu0 0.0
      %415 = vmatmul.mubr.f32.gmra.mrb[0].mxu0 %v293
      %v416 = vpop.f32.mrb[0].mxu0
      %v417 = vadd.f32 0.0, %v416
      %v418 = vpop.f32.mrb[0].mxu0
      %419 = vmatprep.mubr.f32.mxu0 0.0
      %420 = vmatmul.mubr.f32.gmra.mrb[0].mxu0 %v294
      %v421 = vpop.f32.mrb[0].mxu0
      %v422 = vadd.f32 0.0, %v421
      %v423 = vpop.f32.mrb[0].mxu0
      %424 = vmatprep.mubr.f32.mxu0 0.0
      %425 = vmatmul.mubr.f32.gmra.mrb[0].mxu0 %v295
      %v426 = vpop.f32.mrb[0].mxu0
      %v427 = vadd.f32 0.0, %v426
      %v428 = vpop.f32.mrb[0].mxu0
      %429 = vmatprep.mubr.f32.mxu0 0.0
      %430 = vmatmul.mubr.f32.gmra.mrb[0].mxu0 %v296
      %v431 = vpop.f32.mrb[0].mxu0
      %v432 = vadd.f32 0.0, %v431
      %v433 = vpop.f32.mrb[0].mxu0
      %434 = vmatprep.mubr.f32.mxu0 0.0
      %435 = vmatmul.mubr.f32.gmra.mrb[0].mxu0 %v297
      %v436 = vpop.f32.mrb[0].mxu0
      %v437 = vadd.f32 0.0, %v436
      %v438 = vpop.f32.mrb[0].mxu0
      %439 = vmatprep.mubr.f32.mxu0 0.0
      %440 = vmatmul.mubr.f32.gmra.mrb[0].mxu0 %v298
      %v441 = vpop.f32.mrb[0].mxu0
      %v442 = vadd.f32 0.0, %v441
      %v443 = vpop.f32.mrb[0].mxu0
      %444 = vmatprep.mubr.f32.mxu0 0.0
      %445 = vmatmul.mubr.f32.gmra.mrb[0].mxu0 %v299
      %v446 = vpop.f32.mrb[0].mxu0
      %v447 = vadd.f32 0.0, %v446
      %v448 = vpop.f32.mrb[0].mxu0
      %449 = vmatprep.mubr.f32.mxu0 0.0
      %450 = vmatmul.mubr.f32.gmra.mrb[0].mxu0 %v300
      %v451 = vpop.f32.mrb[0].mxu0
      %v452 = vadd.f32 0.0, %v451
      %v453 = vpop.f32.mrb[0].mxu0
      %454 = vmatprep.mubr.f32.mxu0 0.0
      %455 = vmatmul.mubr.f32.gmra.mrb[0].mxu0 %v301
      %v456 = vpop.f32.mrb[0].mxu0
      %v457 = vadd.f32 0.0, %v456
      %v458 = vpop.f32.mrb[0].mxu0
      %459 = vmatprep.mubr.f32.mxu0 0.0
      %460 = vmatmul.mubr.f32.gmra.mrb[0].mxu0 %v302
      %v461 = vpop.f32.mrb[0].mxu0
      %v462 = vadd.f32 0.0, %v461
      %v463 = vpop.f32.mrb[0].mxu0
      %464 = vdwg.mxu0
      %v465 = vld [vmem:[%s3] sm:$0xff]
      %v466 = vld [vmem:[%s3 + $0x8] sm:$0xff]
      %v467 = vld [vmem:[%s3 + $0x10] sm:$0xff]
      %v468 = vld [vmem:[%s3 + $0x18] sm:$0xff]
      %v469 = vld [vmem:[%s3 + $0x20] sm:$0xff]
      %v470 = vld [vmem:[%s3 + $0x28] sm:$0xff]
      %v471 = vld [vmem:[%s3 + $0x30] sm:$0xff]
      %v472 = vld [vmem:[%s3 + $0x38] sm:$0xff]
      %v473 = vld [vmem:[%s3 + $0x40] sm:$0xff]
      %v474 = vld [vmem:[%s3 + $0x48] sm:$0xff]
      %v475 = vld [vmem:[%s3 + $0x50] sm:$0xff]
      %v476 = vld [vmem:[%s3 + $0x58] sm:$0xff]
      %v477 = vld [vmem:[%s3 + $0x60] sm:$0xff]
      %v478 = vld [vmem:[%s3 + $0x68] sm:$0xff]
      %v479 = vld [vmem:[%s3 + $0x70] sm:$0xff]
      %v480 = vld [vmem:[%s3 + $0x78] sm:$0xff]
      %s481 = scalar_lea.vmem %s3, 128
      %v482 = vld [vmem:[%s481] sm:$0xff]
      %v483 = vld [vmem:[%s481 + $0x8] sm:$0xff]
      %v484 = vld [vmem:[%s481 + $0x10] sm:$0xff]
      %v485 = vld [vmem:[%s481 + $0x18] sm:$0xff]
      %v486 = vld [vmem:[%s481 + $0x20] sm:$0xff]
      %v487 = vld [vmem:[%s481 + $0x28] sm:$0xff]
      %v488 = vld [vmem:[%s481 + $0x30] sm:$0xff]
      %v489 = vld [vmem:[%s481 + $0x38] sm:$0xff]
      %v490 = vld [vmem:[%s481 + $0x40] sm:$0xff]
      %v491 = vld [vmem:[%s481 + $0x48] sm:$0xff]
      %v492 = vld [vmem:[%s481 + $0x50] sm:$0xff]
      %v493 = vld [vmem:[%s481 + $0x58] sm:$0xff]
      %v494 = vld [vmem:[%s481 + $0x60] sm:$0xff]
      %v495 = vld [vmem:[%s481 + $0x68] sm:$0xff]
      %v496 = vld [vmem:[%s481 + $0x70] sm:$0xff]
      %v497 = vld [vmem:[%s481 + $0x78] sm:$0xff]
      %498 = vmatprep.subr.mxu0 0.0
      %499 = vmatpush1.msra.mxu0 %v482
      %500 = vmatprep.subr.mxu0 0.0
      %501 = vmatpush1.msra.mxu0 %v483
      %502 = vmatprep.subr.mxu0 0.0
      %503 = vmatpush1.msra.mxu0 %v484
      %504 = vmatprep.subr.mxu0 0.0
      %505 = vmatpush1.msra.mxu0 %v485
      %506 = vmatprep.subr.mxu0 0.0
      %507 = vmatpush1.msra.mxu0 %v486
      %508 = vmatprep.subr.mxu0 0.0
      %509 = vmatpush1.msra.mxu0 %v487
      %510 = vmatprep.subr.mxu0 0.0
      %511 = vmatpush1.msra.mxu0 %v488
      %512 = vmatprep.subr.mxu0 0.0
      %513 = vmatpush1.msra.mxu0 %v489
      %514 = vmatprep.subr.mxu0 0.0
      %515 = vmatpush1.msra.mxu0 %v490
      %516 = vmatprep.subr.mxu0 0.0
      %517 = vmatpush1.msra.mxu0 %v491
      %518 = vmatprep.subr.mxu0 0.0
      %519 = vmatpush1.msra.mxu0 %v492
      %520 = vmatprep.subr.mxu0 0.0
      %521 = vmatpush1.msra.mxu0 %v493
      %522 = vmatprep.subr.mxu0 0.0
      %523 = vmatpush1.msra.mxu0 %v494
      %524 = vmatprep.subr.mxu0 0.0
      %525 = vmatpush1.msra.mxu0 %v495
      %526 = vmatprep.subr.mxu0 0.0
      %527 = vmatpush1.msra.mxu0 %v496
      %528 = vmatprep.subr.mxu0 0.0
      %529 = vmatpush1.msra.mxu0 %v497
      %530 = vmatprep.subr.mxu0 0.0
      %531 = vmatpush1.msra.mxu0 0.0
      %532 = vmatprep.subr.mxu0 0.0
      %533 = vmatpush1.msra.mxu0 0.0
      %534 = vmatprep.subr.mxu0 0.0
      %535 = vmatpush1.msra.mxu0 0.0
      %536 = vmatprep.subr.mxu0 0.0
      %537 = vmatpush1.msra.mxu0 0.0
      %538 = vmatprep.subr.mxu0 0.0
      %539 = vmatpush1.msra.mxu0 0.0
      %540 = vmatprep.subr.mxu0 0.0
      %541 = vmatpush1.msra.mxu0 0.0
      %542 = vmatprep.subr.mxu0 0.0
      %543 = vmatpush1.msra.mxu0 0.0
      %544 = vmatprep.subr.mxu0 0.0
      %545 = vmatpush1.msra.mxu0 0.0
      %546 = vmatprep.subr.mxu0 0.0
      %547 = vmatpush1.msra.mxu0 0.0
      %548 = vmatprep.subr.mxu0 0.0
      %549 = vmatpush1.msra.mxu0 0.0
      %550 = vmatprep.subr.mxu0 0.0
      %551 = vmatpush1.msra.mxu0 0.0
      %552 = vmatprep.subr.mxu0 0.0
      %553 = vmatpush1.msra.mxu0 0.0
      %554 = vmatprep.subr.mxu0 0.0
      %555 = vmatpush1.msra.mxu0 0.0
      %556 = vmatprep.subr.mxu0 0.0
      %557 = vmatpush1.msra.mxu0 0.0
      %558 = vmatprep.subr.mxu0 0.0
      %559 = vmatpush1.msra.mxu0 0.0
      %560 = vmatprep.subr.mxu0 0.0
      %561 = vmatpush1.msra.mxu0 0.0
      %562 = vmatprep.mubr.f32.mxu0 0.0
      %563 = vmatmul.mubr.f32.gmra.mrb[0].mxu0 %v304
      %v564 = vpop.f32.mrb[0].mxu0
      %v565 = vadd.f32 0.0, %v564
      %v566 = vpop.f32.mrb[0].mxu0
      %567 = vmatprep.mubr.f32.mxu0 0.0
      %568 = vmatmul.mubr.f32.gmra.mrb[0].mxu0 %v305
      %v569 = vpop.f32.mrb[0].mxu0
      %v570 = vadd.f32 0.0, %v569
      %v571 = vpop.f32.mrb[0].mxu0
      %572 = vmatprep.mubr.f32.mxu0 0.0
      %573 = vmatmul.mubr.f32.gmra.mrb[0].mxu0 %v306
      %v574 = vpop.f32.mrb[0].mxu0
      %v575 = vadd.f32 0.0, %v574
      %v576 = vpop.f32.mrb[0].mxu0
      %577 = vmatprep.mubr.f32.mxu0 0.0
      %578 = vmatmul.mubr.f32.gmra.mrb[0].mxu0 %v307
      %v579 = vpop.f32.mrb[0].mxu0
      %v580 = vadd.f32 0.0, %v579
      %v581 = vpop.f32.mrb[0].mxu0
      %582 = vmatprep.mubr.f32.mxu0 0.0
      %583 = vmatmul.mubr.f32.gmra.mrb[0].mxu0 %v308
      %v584 = vpop.f32.mrb[0].mxu0
      %v585 = vadd.f32 0.0, %v584
      %v586 = vpop.f32.mrb[0].mxu0
      %587 = vmatprep.mubr.f32.mxu0 0.0
      %588 = vmatmul.mubr.f32.gmra.mrb[0].mxu0 %v309
      %v589 = vpop.f32.mrb[0].mxu0
      %v590 = vadd.f32 0.0, %v589
      %v591 = vpop.f32.mrb[0].mxu0
      %592 = vmatprep.mubr.f32.mxu0 0.0
      %593 = vmatmul.mubr.f32.gmra.mrb[0].mxu0 %v310
      %v594 = vpop.f32.mrb[0].mxu0
      %v595 = vadd.f32 0.0, %v594
      %v596 = vpop.f32.mrb[0].mxu0
      %597 = vmatprep.mubr.f32.mxu0 0.0
      %598 = vmatmul.mubr.f32.gmra.mrb[0].mxu0 %v311
      %v599 = vpop.f32.mrb[0].mxu0
      %v600 = vadd.f32 0.0, %v599
      %v601 = vpop.f32.mrb[0].mxu0
      %602 = vmatprep.mubr.f32.mxu0 0.0
      %603 = vmatmul.mubr.f32.gmra.mrb[0].mxu0 %v312
      %v604 = vpop.f32.mrb[0].mxu0
      %v605 = vadd.f32 0.0, %v604
      %v606 = vpop.f32.mrb[0].mxu0
      %607 = vmatprep.mubr.f32.mxu0 0.0
      %608 = vmatmul.mubr.f32.gmra.mrb[0].mxu0 %v313
      %v609 = vpop.f32.mrb[0].mxu0
      %v610 = vadd.f32 0.0, %v609
      %v611 = vpop.f32.mrb[0].mxu0
      %612 = vmatprep.mubr.f32.mxu0 0.0
      %613 = vmatmul.mubr.f32.gmra.mrb[0].mxu0 %v314
      %v614 = vpop.f32.mrb[0].mxu0
      %v615 = vadd.f32 0.0, %v614
      %v616 = vpop.f32.mrb[0].mxu0
      %617 = vmatprep.mubr.f32.mxu0 0.0
      %618 = vmatmul.mubr.f32.gmra.mrb[0].mxu0 %v315
      %v619 = vpop.f32.mrb[0].mxu0
      %v620 = vadd.f32 0.0, %v619
      %v621 = vpop.f32.mrb[0].mxu0
      %622 = vmatprep.mubr.f32.mxu0 0.0
      %623 = vmatmul.mubr.f32.gmra.mrb[0].mxu0 %v316
      %v624 = vpop.f32.mrb[0].mxu0
      %v625 = vadd.f32 0.0, %v624
      %v626 = vpop.f32.mrb[0].mxu0
      %627 = vmatprep.mubr.f32.mxu0 0.0
      %628 = vmatmul.mubr.f32.gmra.mrb[0].mxu0 %v317
      %v629 = vpop.f32.mrb[0].mxu0
      %v630 = vadd.f32 0.0, %v629
      %v631 = vpop.f32.mrb[0].mxu0
      %632 = vmatprep.mubr.f32.mxu0 0.0
      %633 = vmatmul.mubr.f32.gmra.mrb[0].mxu0 %v318
      %v634 = vpop.f32.mrb[0].mxu0
      %v635 = vadd.f32 0.0, %v634
      %v636 = vpop.f32.mrb[0].mxu0
      %637 = vmatprep.mubr.f32.mxu0 0.0
      %638 = vmatmul.mubr.f32.gmra.mrb[0].mxu0 %v319
      %v639 = vpop.f32.mrb[0].mxu0
      %v640 = vadd.f32 0.0, %v639
      %v641 = vpop.f32.mrb[0].mxu0
      %642 = vdwg.mxu0
      %643 = vmatprep.subr.mxu0 0.0
      %644 = vmatpush1.msra.mxu0 %v465
      %645 = vmatprep.subr.mxu0 0.0
      %646 = vmatpush1.msra.mxu0 %v466
      %647 = vmatprep.subr.mxu0 0.0
      %648 = vmatpush1.msra.mxu0 %v467
      %649 = vmatprep.subr.mxu0 0.0
      %650 = vmatpush1.msra.mxu0 %v468
      %651 = vmatprep.subr.mxu0 0.0
      %652 = vmatpush1.msra.mxu0 %v469
      %653 = vmatprep.subr.mxu0 0.0
      %654 = vmatpush1.msra.mxu0 %v470
      %655 = vmatprep.subr.mxu0 0.0
      %656 = vmatpush1.msra.mxu0 %v471
      %657 = vmatprep.subr.mxu0 0.0
      %658 = vmatpush1.msra.mxu0 %v472
      %659 = vmatprep.subr.mxu0 0.0
      %660 = vmatpush1.msra.mxu0 %v473
      %661 = vmatprep.subr.mxu0 0.0
      %662 = vmatpush1.msra.mxu0 %v474
      %663 = vmatprep.subr.mxu0 0.0
      %664 = vmatpush1.msra.mxu0 %v475
      %665 = vmatprep.subr.mxu0 0.0
      %666 = vmatpush1.msra.mxu0 %v476
      %667 = vmatprep.subr.mxu0 0.0
      %668 = vmatpush1.msra.mxu0 %v477
      %669 = vmatprep.subr.mxu0 0.0
      %670 = vmatpush1.msra.mxu0 %v478
      %671 = vmatprep.subr.mxu0 0.0
      %672 = vmatpush1.msra.mxu0 %v479
      %673 = vmatprep.subr.mxu0 0.0
      %674 = vmatpush1.msra.mxu0 %v480
      %675 = vmatprep.subr.mxu0 0.0
      %676 = vmatpush1.msra.mxu0 0.0
      %677 = vmatprep.subr.mxu0 0.0
      %678 = vmatpush1.msra.mxu0 0.0
      %679 = vmatprep.subr.mxu0 0.0
      %680 = vmatpush1.msra.mxu0 0.0
      %681 = vmatprep.subr.mxu0 0.0
      %682 = vmatpush1.msra.mxu0 0.0
      %683 = vmatprep.subr.mxu0 0.0
      %684 = vmatpush1.msra.mxu0 0.0
      %685 = vmatprep.subr.mxu0 0.0
      %686 = vmatpush1.msra.mxu0 0.0
      %687 = vmatprep.subr.mxu0 0.0
      %688 = vmatpush1.msra.mxu0 0.0
      %689 = vmatprep.subr.mxu0 0.0
      %690 = vmatpush1.msra.mxu0 0.0
      %691 = vmatprep.subr.mxu0 0.0
      %692 = vmatpush1.msra.mxu0 0.0
      %693 = vmatprep.subr.mxu0 0.0
      %694 = vmatpush1.msra.mxu0 0.0
      %695 = vmatprep.subr.mxu0 0.0
      %696 = vmatpush1.msra.mxu0 0.0
      %697 = vmatprep.subr.mxu0 0.0
      %698 = vmatpush1.msra.mxu0 0.0
      %699 = vmatprep.subr.mxu0 0.0
      %700 = vmatpush1.msra.mxu0 0.0
      %701 = vmatprep.subr.mxu0 0.0
      %702 = vmatpush1.msra.mxu0 0.0
      %703 = vmatprep.subr.mxu0 0.0
      %704 = vmatpush1.msra.mxu0 0.0
      %705 = vmatprep.subr.mxu0 0.0
      %706 = vmatpush1.msra.mxu0 0.0
      %707 = vmatprep.mubr.f32.mxu0 0.0
      %708 = vmatmul.mubr.f32.gmra.mrb[0].mxu0 %v387
      %v709 = vpop.f32.mrb[0].mxu0
      %v710 = vadd.f32 %v565, %v709
      %v711 = vpop.f32.mrb[0].mxu0
      %712 = vmatprep.mubr.f32.mxu0 0.0
      %713 = vmatmul.mubr.f32.gmra.mrb[0].mxu0 %v392
      %v714 = vpop.f32.mrb[0].mxu0
      %v715 = vadd.f32 %v570, %v714
      %v716 = vpop.f32.mrb[0].mxu0
      %717 = vmatprep.mubr.f32.mxu0 0.0
      %718 = vmatmul.mubr.f32.gmra.mrb[0].mxu0 %v397
      %v719 = vpop.f32.mrb[0].mxu0
      %v720 = vadd.f32 %v575, %v719
      %v721 = vpop.f32.mrb[0].mxu0
      %722 = vmatprep.mubr.f32.mxu0 0.0
      %723 = vmatmul.mubr.f32.gmra.mrb[0].mxu0 %v402
      %v724 = vpop.f32.mrb[0].mxu0
      %v725 = vadd.f32 %v580, %v724
      %v726 = vpop.f32.mrb[0].mxu0
      %727 = vmatprep.mubr.f32.mxu0 0.0
      %728 = vmatmul.mubr.f32.gmra.mrb[0].mxu0 %v407
      %v729 = vpop.f32.mrb[0].mxu0
      %v730 = vadd.f32 %v585, %v729
      %v731 = vpop.f32.mrb[0].mxu0
      %732 = vmatprep.mubr.f32.mxu0 0.0
      %733 = vmatmul.mubr.f32.gmra.mrb[0].mxu0 %v412
      %v734 = vpop.f32.mrb[0].mxu0
      %v735 = vadd.f32 %v590, %v734
      %v736 = vpop.f32.mrb[0].mxu0
      %737 = vmatprep.mubr.f32.mxu0 0.0
      %738 = vmatmul.mubr.f32.gmra.mrb[0].mxu0 %v417
      %v739 = vpop.f32.mrb[0].mxu0
      %v740 = vadd.f32 %v595, %v739
      %v741 = vpop.f32.mrb[0].mxu0
      %742 = vmatprep.mubr.f32.mxu0 0.0
      %743 = vmatmul.mubr.f32.gmra.mrb[0].mxu0 %v422
      %v744 = vpop.f32.mrb[0].mxu0
      %v745 = vadd.f32 %v600, %v744
      %v746 = vpop.f32.mrb[0].mxu0
      %747 = vmatprep.mubr.f32.mxu0 0.0
      %748 = vmatmul.mubr.f32.gmra.mrb[0].mxu0 %v427
      %v749 = vpop.f32.mrb[0].mxu0
      %v750 = vadd.f32 %v605, %v749
      %v751 = vpop.f32.mrb[0].mxu0
      %752 = vmatprep.mubr.f32.mxu0 0.0
      %753 = vmatmul.mubr.f32.gmra.mrb[0].mxu0 %v432
      %v754 = vpop.f32.mrb[0].mxu0
      %v755 = vadd.f32 %v610, %v754
      %v756 = vpop.f32.mrb[0].mxu0
      %757 = vmatprep.mubr.f32.mxu0 0.0
      %758 = vmatmul.mubr.f32.gmra.mrb[0].mxu0 %v437
      %v759 = vpop.f32.mrb[0].mxu0
      %v760 = vadd.f32 %v615, %v759
      %v761 = vpop.f32.mrb[0].mxu0
      %762 = vmatprep.mubr.f32.mxu0 0.0
      %763 = vmatmul.mubr.f32.gmra.mrb[0].mxu0 %v442
      %v764 = vpop.f32.mrb[0].mxu0
      %v765 = vadd.f32 %v620, %v764
      %v766 = vpop.f32.mrb[0].mxu0
      %767 = vmatprep.mubr.f32.mxu0 0.0
      %768 = vmatmul.mubr.f32.gmra.mrb[0].mxu0 %v447
      %v769 = vpop.f32.mrb[0].mxu0
      %v770 = vadd.f32 %v625, %v769
      %v771 = vpop.f32.mrb[0].mxu0
      %772 = vmatprep.mubr.f32.mxu0 0.0
      %773 = vmatmul.mubr.f32.gmra.mrb[0].mxu0 %v452
      %v774 = vpop.f32.mrb[0].mxu0
      %v775 = vadd.f32 %v630, %v774
      %v776 = vpop.f32.mrb[0].mxu0
      %777 = vmatprep.mubr.f32.mxu0 0.0
      %778 = vmatmul.mubr.f32.gmra.mrb[0].mxu0 %v457
      %v779 = vpop.f32.mrb[0].mxu0
      %v780 = vadd.f32 %v635, %v779
      %v781 = vpop.f32.mrb[0].mxu0
      %782 = vmatprep.mubr.f32.mxu0 0.0
      %783 = vmatmul.mubr.f32.gmra.mrb[0].mxu0 %v462
      %v784 = vpop.f32.mrb[0].mxu0
      %v785 = vadd.f32 %v640, %v784
      %v786 = vpop.f32.mrb[0].mxu0
      %787 = vdwg.mxu0
      %v788 = vlaneseq
      %v789 = vshrl.u32 %v788, 7
      %v790 = vsub.s32 0, %v789
      %v791 = vrot.slane %v303, %v790
      %v792 = vadd.f32 %v710, %v791
      %v793 = vadd.f32 %v715, %v791
      %v794 = vadd.f32 %v720, %v791
      %v795 = vadd.f32 %v725, %v791
      %v796 = vadd.f32 %v730, %v791
      %v797 = vadd.f32 %v735, %v791
      %v798 = vadd.f32 %v740, %v791
      %v799 = vadd.f32 %v745, %v791
      %v800 = vadd.f32 %v750, %v791
      %v801 = vadd.f32 %v755, %v791
      %v802 = vadd.f32 %v760, %v791
      %v803 = vadd.f32 %v765, %v791
      %v804 = vadd.f32 %v770, %v791
      %v805 = vadd.f32 %v775, %v791
      %v806 = vadd.f32 %v780, %v791
      %v807 = vadd.f32 %v785, %v791
      %v808 = vmax.f32 %v792, 0.0
      %v809 = vmax.f32 %v793, 0.0
      %v810 = vmax.f32 %v794, 0.0
      %v811 = vmax.f32 %v795, 0.0
      %v812 = vmax.f32 %v796, 0.0
      %v813 = vmax.f32 %v797, 0.0
      %v814 = vmax.f32 %v798, 0.0
      %v815 = vmax.f32 %v799, 0.0
      %v816 = vmax.f32 %v800, 0.0
      %v817 = vmax.f32 %v801, 0.0
      %v818 = vmax.f32 %v802, 0.0
      %v819 = vmax.f32 %v803, 0.0
      %v820 = vmax.f32 %v804, 0.0
      %v821 = vmax.f32 %v805, 0.0
      %v822 = vmax.f32 %v806, 0.0
      %v823 = vmax.f32 %v807, 0.0
      %824 = vmatprep.subr.mxu0 0.0
      %825 = vmatpush1.msra.mxu0 %v808
      %826 = vmatprep.subr.mxu0 0.0
      %827 = vmatpush1.msra.mxu0 %v809
      %828 = vmatprep.subr.mxu0 0.0
      %829 = vmatpush1.msra.mxu0 %v810
      %830 = vmatprep.subr.mxu0 0.0
      %831 = vmatpush1.msra.mxu0 %v811
      %832 = vmatprep.subr.mxu0 0.0
      %833 = vmatpush1.msra.mxu0 %v812
      %834 = vmatprep.subr.mxu0 0.0
      %835 = vmatpush1.msra.mxu0 %v813
      %836 = vmatprep.subr.mxu0 0.0
      %837 = vmatpush1.msra.mxu0 %v814
      %838 = vmatprep.subr.mxu0 0.0
      %839 = vmatpush1.msra.mxu0 %v815
      %840 = vmatprep.subr.mxu0 0.0
      %841 = vmatpush1.msra.mxu0 %v816
      %842 = vmatprep.subr.mxu0 0.0
      %843 = vmatpush1.msra.mxu0 %v817
      %844 = vmatprep.subr.mxu0 0.0
      %845 = vmatpush1.msra.mxu0 %v818
      %846 = vmatprep.subr.mxu0 0.0
      %847 = vmatpush1.msra.mxu0 %v819
      %848 = vmatprep.subr.mxu0 0.0
      %849 = vmatpush1.msra.mxu0 %v820
      %850 = vmatprep.subr.mxu0 0.0
      %851 = vmatpush1.msra.mxu0 %v821
      %852 = vmatprep.subr.mxu0 0.0
      %853 = vmatpush1.msra.mxu0 %v822
      %854 = vmatprep.subr.mxu0 0.0
      %855 = vmatpush1.msra.mxu0 %v823
      %856 = vmatprep.subr.mxu0 0.0
      %857 = vmatpush1.msra.mxu0 0.0
      %858 = vmatprep.subr.mxu0 0.0
      %859 = vmatpush1.msra.mxu0 0.0
      %860 = vmatprep.subr.mxu0 0.0
      %861 = vmatpush1.msra.mxu0 0.0
      %862 = vmatprep.subr.mxu0 0.0
      %863 = vmatpush1.msra.mxu0 0.0
      %864 = vmatprep.subr.mxu0 0.0
      %865 = vmatpush1.msra.mxu0 0.0
      %866 = vmatprep.subr.mxu0 0.0
      %867 = vmatpush1.msra.mxu0 0.0
      %868 = vmatprep.subr.mxu0 0.0
      %869 = vmatpush1.msra.mxu0 0.0
      %870 = vmatprep.subr.mxu0 0.0
      %871 = vmatpush1.msra.mxu0 0.0
      %872 = vmatprep.subr.mxu0 0.0
      %873 = vmatpush1.msra.mxu0 0.0
      %874 = vmatprep.subr.mxu0 0.0
      %875 = vmatpush1.msra.mxu0 0.0
      %876 = vmatprep.subr.mxu0 0.0
      %877 = vmatpush1.msra.mxu0 0.0
      %878 = vmatprep.subr.mxu0 0.0
      %879 = vmatpush1.msra.mxu0 0.0
      %880 = vmatprep.subr.mxu0 0.0
      %881 = vmatpush1.msra.mxu0 0.0
      %882 = vmatprep.subr.mxu0 0.0
      %883 = vmatpush1.msra.mxu0 0.0
      %884 = vmatprep.subr.mxu0 0.0
      %885 = vmatpush1.msra.mxu0 0.0
      %886 = vmatprep.subr.mxu0 0.0
      %887 = vmatpush1.msra.mxu0 0.0
      %888 = vmatprep.mubr.f32.mxu0 0.0
      %889 = vmatmul.mubr.f32.gmra.mrb[0].mxu0 %v287
      %v890 = vpop.f32.mrb[0].mxu0
      %v891 = vadd.f32 0.0, %v890
      %v892 = vpop.f32.mrb[0].mxu0
      %893 = vmatprep.mubr.f32.mxu0 0.0
      %894 = vmatmul.mubr.f32.gmra.mrb[0].mxu0 %v288
      %v895 = vpop.f32.mrb[0].mxu0
      %v896 = vadd.f32 0.0, %v895
      %v897 = vpop.f32.mrb[0].mxu0
      %898 = vmatprep.mubr.f32.mxu0 0.0
      %899 = vmatmul.mubr.f32.gmra.mrb[0].mxu0 %v289
      %v900 = vpop.f32.mrb[0].mxu0
      %v901 = vadd.f32 0.0, %v900
      %v902 = vpop.f32.mrb[0].mxu0
      %903 = vmatprep.mubr.f32.mxu0 0.0
      %904 = vmatmul.mubr.f32.gmra.mrb[0].mxu0 %v290
      %v905 = vpop.f32.mrb[0].mxu0
      %v906 = vadd.f32 0.0, %v905
      %v907 = vpop.f32.mrb[0].mxu0
      %908 = vmatprep.mubr.f32.mxu0 0.0
      %909 = vmatmul.mubr.f32.gmra.mrb[0].mxu0 %v291
      %v910 = vpop.f32.mrb[0].mxu0
      %v911 = vadd.f32 0.0, %v910
      %v912 = vpop.f32.mrb[0].mxu0
      %913 = vmatprep.mubr.f32.mxu0 0.0
      %914 = vmatmul.mubr.f32.gmra.mrb[0].mxu0 %v292
      %v915 = vpop.f32.mrb[0].mxu0
      %v916 = vadd.f32 0.0, %v915
      %v917 = vpop.f32.mrb[0].mxu0
      %918 = vmatprep.mubr.f32.mxu0 0.0
      %919 = vmatmul.mubr.f32.gmra.mrb[0].mxu0 %v293
      %v920 = vpop.f32.mrb[0].mxu0
      %v921 = vadd.f32 0.0, %v920
      %v922 = vpop.f32.mrb[0].mxu0
      %923 = vmatprep.mubr.f32.mxu0 0.0
      %924 = vmatmul.mubr.f32.gmra.mrb[0].mxu0 %v294
      %v925 = vpop.f32.mrb[0].mxu0
      %v926 = vadd.f32 0.0, %v925
      %v927 = vpop.f32.mrb[0].mxu0
      %928 = vmatprep.mubr.f32.mxu0 0.0
      %929 = vmatmul.mubr.f32.gmra.mrb[0].mxu0 %v295
      %v930 = vpop.f32.mrb[0].mxu0
      %v931 = vadd.f32 0.0, %v930
      %v932 = vpop.f32.mrb[0].mxu0
      %933 = vmatprep.mubr.f32.mxu0 0.0
      %934 = vmatmul.mubr.f32.gmra.mrb[0].mxu0 %v296
      %v935 = vpop.f32.mrb[0].mxu0
      %v936 = vadd.f32 0.0, %v935
      %v937 = vpop.f32.mrb[0].mxu0
      %938 = vmatprep.mubr.f32.mxu0 0.0
      %939 = vmatmul.mubr.f32.gmra.mrb[0].mxu0 %v297
      %v940 = vpop.f32.mrb[0].mxu0
      %v941 = vadd.f32 0.0, %v940
      %v942 = vpop.f32.mrb[0].mxu0
      %943 = vmatprep.mubr.f32.mxu0 0.0
      %944 = vmatmul.mubr.f32.gmra.mrb[0].mxu0 %v298
      %v945 = vpop.f32.mrb[0].mxu0
      %v946 = vadd.f32 0.0, %v945
      %v947 = vpop.f32.mrb[0].mxu0
      %948 = vmatprep.mubr.f32.mxu0 0.0
      %949 = vmatmul.mubr.f32.gmra.mrb[0].mxu0 %v299
      %v950 = vpop.f32.mrb[0].mxu0
      %v951 = vadd.f32 0.0, %v950
      %v952 = vpop.f32.mrb[0].mxu0
      %953 = vmatprep.mubr.f32.mxu0 0.0
      %954 = vmatmul.mubr.f32.gmra.mrb[0].mxu0 %v300
      %v955 = vpop.f32.mrb[0].mxu0
      %v956 = vadd.f32 0.0, %v955
      %v957 = vpop.f32.mrb[0].mxu0
      %958 = vmatprep.mubr.f32.mxu0 0.0
      %959 = vmatmul.mubr.f32.gmra.mrb[0].mxu0 %v301
      %v960 = vpop.f32.mrb[0].mxu0
      %v961 = vadd.f32 0.0, %v960
      %v962 = vpop.f32.mrb[0].mxu0
      %963 = vmatprep.mubr.f32.mxu0 0.0
      %964 = vmatmul.mubr.f32.gmra.mrb[0].mxu0 %v302
      %v965 = vpop.f32.mrb[0].mxu0
      %v966 = vadd.f32 0.0, %v965
      %v967 = vpop.f32.mrb[0].mxu0
      %968 = vdwg.mxu0
      %s969 = scalar_lea.vmem %s3, 256
      %v970 = vld [vmem:[%s969] sm:$0xff]
      %v971 = vld [vmem:[%s969 + $0x8] sm:$0xff]
      %v972 = vld [vmem:[%s969 + $0x10] sm:$0xff]
      %v973 = vld [vmem:[%s969 + $0x18] sm:$0xff]
      %v974 = vld [vmem:[%s969 + $0x20] sm:$0xff]
      %v975 = vld [vmem:[%s969 + $0x28] sm:$0xff]
      %v976 = vld [vmem:[%s969 + $0x30] sm:$0xff]
      %v977 = vld [vmem:[%s969 + $0x38] sm:$0xff]
      %v978 = vld [vmem:[%s969 + $0x40] sm:$0xff]
      %v979 = vld [vmem:[%s969 + $0x48] sm:$0xff]
      %v980 = vld [vmem:[%s969 + $0x50] sm:$0xff]
      %v981 = vld [vmem:[%s969 + $0x58] sm:$0xff]
      %v982 = vld [vmem:[%s969 + $0x60] sm:$0xff]
      %v983 = vld [vmem:[%s969 + $0x68] sm:$0xff]
      %v984 = vld [vmem:[%s969 + $0x70] sm:$0xff]
      %v985 = vld [vmem:[%s969 + $0x78] sm:$0xff]
      %s986 = scalar_lea.vmem %s3, 384
      %v987 = vld [vmem:[%s986] sm:$0xff]
      %v988 = vld [vmem:[%s986 + $0x8] sm:$0xff]
      %v989 = vld [vmem:[%s986 + $0x10] sm:$0xff]
      %v990 = vld [vmem:[%s986 + $0x18] sm:$0xff]
      %v991 = vld [vmem:[%s986 + $0x20] sm:$0xff]
      %v992 = vld [vmem:[%s986 + $0x28] sm:$0xff]
      %v993 = vld [vmem:[%s986 + $0x30] sm:$0xff]
      %v994 = vld [vmem:[%s986 + $0x38] sm:$0xff]
      %v995 = vld [vmem:[%s986 + $0x40] sm:$0xff]
      %v996 = vld [vmem:[%s986 + $0x48] sm:$0xff]
      %v997 = vld [vmem:[%s986 + $0x50] sm:$0xff]
      %v998 = vld [vmem:[%s986 + $0x58] sm:$0xff]
      %v999 = vld [vmem:[%s986 + $0x60] sm:$0xff]
      %v1000 = vld [vmem:[%s986 + $0x68] sm:$0xff]
      %v1001 = vld [vmem:[%s986 + $0x70] sm:$0xff]
      %v1002 = vld [vmem:[%s986 + $0x78] sm:$0xff]
      %1003 = vmatprep.subr.mxu0 0.0
      %1004 = vmatpush1.msra.mxu0 %v987
      %1005 = vmatprep.subr.mxu0 0.0
      %1006 = vmatpush1.msra.mxu0 %v988
      %1007 = vmatprep.subr.mxu0 0.0
      %1008 = vmatpush1.msra.mxu0 %v989
      %1009 = vmatprep.subr.mxu0 0.0
      %1010 = vmatpush1.msra.mxu0 %v990
      %1011 = vmatprep.subr.mxu0 0.0
      %1012 = vmatpush1.msra.mxu0 %v991
      %1013 = vmatprep.subr.mxu0 0.0
      %1014 = vmatpush1.msra.mxu0 %v992
      %1015 = vmatprep.subr.mxu0 0.0
      %1016 = vmatpush1.msra.mxu0 %v993
      %1017 = vmatprep.subr.mxu0 0.0
      %1018 = vmatpush1.msra.mxu0 %v994
      %1019 = vmatprep.subr.mxu0 0.0
      %1020 = vmatpush1.msra.mxu0 %v995
      %1021 = vmatprep.subr.mxu0 0.0
      %1022 = vmatpush1.msra.mxu0 %v996
      %1023 = vmatprep.subr.mxu0 0.0
      %1024 = vmatpush1.msra.mxu0 %v997
      %1025 = vmatprep.subr.mxu0 0.0
      %1026 = vmatpush1.msra.mxu0 %v998
      %1027 = vmatprep.subr.mxu0 0.0
      %1028 = vmatpush1.msra.mxu0 %v999
      %1029 = vmatprep.subr.mxu0 0.0
      %1030 = vmatpush1.msra.mxu0 %v1000
      %1031 = vmatprep.subr.mxu0 0.0
      %1032 = vmatpush1.msra.mxu0 %v1001
      %1033 = vmatprep.subr.mxu0 0.0
      %1034 = vmatpush1.msra.mxu0 %v1002
      %1035 = vmatprep.subr.mxu0 0.0
      %1036 = vmatpush1.msra.mxu0 0.0
      %1037 = vmatprep.subr.mxu0 0.0
      %1038 = vmatpush1.msra.mxu0 0.0
      %1039 = vmatprep.subr.mxu0 0.0
      %1040 = vmatpush1.msra.mxu0 0.0
      %1041 = vmatprep.subr.mxu0 0.0
      %1042 = vmatpush1.msra.mxu0 0.0
      %1043 = vmatprep.subr.mxu0 0.0
      %1044 = vmatpush1.msra.mxu0 0.0
      %1045 = vmatprep.subr.mxu0 0.0
      %1046 = vmatpush1.msra.mxu0 0.0
      %1047 = vmatprep.subr.mxu0 0.0
      %1048 = vmatpush1.msra.mxu0 0.0
      %1049 = vmatprep.subr.mxu0 0.0
      %1050 = vmatpush1.msra.mxu0 0.0
      %1051 = vmatprep.subr.mxu0 0.0
      %1052 = vmatpush1.msra.mxu0 0.0
      %1053 = vmatprep.subr.mxu0 0.0
      %1054 = vmatpush1.msra.mxu0 0.0
      %1055 = vmatprep.subr.mxu0 0.0
      %1056 = vmatpush1.msra.mxu0 0.0
      %1057 = vmatprep.subr.mxu0 0.0
      %1058 = vmatpush1.msra.mxu0 0.0
      %1059 = vmatprep.subr.mxu0 0.0
      %1060 = vmatpush1.msra.mxu0 0.0
      %1061 = vmatprep.subr.mxu0 0.0
      %1062 = vmatpush1.msra.mxu0 0.0
      %1063 = vmatprep.subr.mxu0 0.0
      %1064 = vmatpush1.msra.mxu0 0.0
      %1065 = vmatprep.subr.mxu0 0.0
      %1066 = vmatpush1.msra.mxu0 0.0
      %1067 = vmatprep.mubr.f32.mxu0 0.0
      %1068 = vmatmul.mubr.f32.gmra.mrb[0].mxu0 %v808
      %v1069 = vpop.f32.mrb[0].mxu0
      %v1070 = vadd.f32 0.0, %v1069
      %v1071 = vpop.f32.mrb[0].mxu0
      %1072 = vmatprep.mubr.f32.mxu0 0.0
      %1073 = vmatmul.mubr.f32.gmra.mrb[0].mxu0 %v809
      %v1074 = vpop.f32.mrb[0].mxu0
      %v1075 = vadd.f32 0.0, %v1074
      %v1076 = vpop.f32.mrb[0].mxu0
      %1077 = vmatprep.mubr.f32.mxu0 0.0
      %1078 = vmatmul.mubr.f32.gmra.mrb[0].mxu0 %v810
      %v1079 = vpop.f32.mrb[0].mxu0
      %v1080 = vadd.f32 0.0, %v1079
      %v1081 = vpop.f32.mrb[0].mxu0
      %1082 = vmatprep.mubr.f32.mxu0 0.0
      %1083 = vmatmul.mubr.f32.gmra.mrb[0].mxu0 %v811
      %v1084 = vpop.f32.mrb[0].mxu0
      %v1085 = vadd.f32 0.0, %v1084
      %v1086 = vpop.f32.mrb[0].mxu0
      %1087 = vmatprep.mubr.f32.mxu0 0.0
      %1088 = vmatmul.mubr.f32.gmra.mrb[0].mxu0 %v812
      %v1089 = vpop.f32.mrb[0].mxu0
      %v1090 = vadd.f32 0.0, %v1089
      %v1091 = vpop.f32.mrb[0].mxu0
      %1092 = vmatprep.mubr.f32.mxu0 0.0
      %1093 = vmatmul.mubr.f32.gmra.mrb[0].mxu0 %v813
      %v1094 = vpop.f32.mrb[0].mxu0
      %v1095 = vadd.f32 0.0, %v1094
      %v1096 = vpop.f32.mrb[0].mxu0
      %1097 = vmatprep.mubr.f32.mxu0 0.0
      %1098 = vmatmul.mubr.f32.gmra.mrb[0].mxu0 %v814
      %v1099 = vpop.f32.mrb[0].mxu0
      %v1100 = vadd.f32 0.0, %v1099
      %v1101 = vpop.f32.mrb[0].mxu0
      %1102 = vmatprep.mubr.f32.mxu0 0.0
      %1103 = vmatmul.mubr.f32.gmra.mrb[0].mxu0 %v815
      %v1104 = vpop.f32.mrb[0].mxu0
      %v1105 = vadd.f32 0.0, %v1104
      %v1106 = vpop.f32.mrb[0].mxu0
      %1107 = vmatprep.mubr.f32.mxu0 0.0
      %1108 = vmatmul.mubr.f32.gmra.mrb[0].mxu0 %v816
      %v1109 = vpop.f32.mrb[0].mxu0
      %v1110 = vadd.f32 0.0, %v1109
      %v1111 = vpop.f32.mrb[0].mxu0
      %1112 = vmatprep.mubr.f32.mxu0 0.0
      %1113 = vmatmul.mubr.f32.gmra.mrb[0].mxu0 %v817
      %v1114 = vpop.f32.mrb[0].mxu0
      %v1115 = vadd.f32 0.0, %v1114
      %v1116 = vpop.f32.mrb[0].mxu0
      %1117 = vmatprep.mubr.f32.mxu0 0.0
      %1118 = vmatmul.mubr.f32.gmra.mrb[0].mxu0 %v818
      %v1119 = vpop.f32.mrb[0].mxu0
      %v1120 = vadd.f32 0.0, %v1119
      %v1121 = vpop.f32.mrb[0].mxu0
      %1122 = vmatprep.mubr.f32.mxu0 0.0
      %1123 = vmatmul.mubr.f32.gmra.mrb[0].mxu0 %v819
      %v1124 = vpop.f32.mrb[0].mxu0
      %v1125 = vadd.f32 0.0, %v1124
      %v1126 = vpop.f32.mrb[0].mxu0
      %1127 = vmatprep.mubr.f32.mxu0 0.0
      %1128 = vmatmul.mubr.f32.gmra.mrb[0].mxu0 %v820
      %v1129 = vpop.f32.mrb[0].mxu0
      %v1130 = vadd.f32 0.0, %v1129
      %v1131 = vpop.f32.mrb[0].mxu0
      %1132 = vmatprep.mubr.f32.mxu0 0.0
      %1133 = vmatmul.mubr.f32.gmra.mrb[0].mxu0 %v821
      %v1134 = vpop.f32.mrb[0].mxu0
      %v1135 = vadd.f32 0.0, %v1134
      %v1136 = vpop.f32.mrb[0].mxu0
      %1137 = vmatprep.mubr.f32.mxu0 0.0
      %1138 = vmatmul.mubr.f32.gmra.mrb[0].mxu0 %v822
      %v1139 = vpop.f32.mrb[0].mxu0
      %v1140 = vadd.f32 0.0, %v1139
      %v1141 = vpop.f32.mrb[0].mxu0
      %1142 = vmatprep.mubr.f32.mxu0 0.0
      %1143 = vmatmul.mubr.f32.gmra.mrb[0].mxu0 %v823
      %v1144 = vpop.f32.mrb[0].mxu0
      %v1145 = vadd.f32 0.0, %v1144
      %v1146 = vpop.f32.mrb[0].mxu0
      %1147 = vdwg.mxu0
      %1148 = vmatprep.subr.mxu0 0.0
      %1149 = vmatpush1.msra.mxu0 %v970
      %1150 = vmatprep.subr.mxu0 0.0
      %1151 = vmatpush1.msra.mxu0 %v971
      %1152 = vmatprep.subr.mxu0 0.0
      %1153 = vmatpush1.msra.mxu0 %v972
      %1154 = vmatprep.subr.mxu0 0.0
      %1155 = vmatpush1.msra.mxu0 %v973
      %1156 = vmatprep.subr.mxu0 0.0
      %1157 = vmatpush1.msra.mxu0 %v974
      %1158 = vmatprep.subr.mxu0 0.0
      %1159 = vmatpush1.msra.mxu0 %v975
      %1160 = vmatprep.subr.mxu0 0.0
      %1161 = vmatpush1.msra.mxu0 %v976
      %1162 = vmatprep.subr.mxu0 0.0
      %1163 = vmatpush1.msra.mxu0 %v977
      %1164 = vmatprep.subr.mxu0 0.0
      %1165 = vmatpush1.msra.mxu0 %v978
      %1166 = vmatprep.subr.mxu0 0.0
      %1167 = vmatpush1.msra.mxu0 %v979
      %1168 = vmatprep.subr.mxu0 0.0
      %1169 = vmatpush1.msra.mxu0 %v980
      %1170 = vmatprep.subr.mxu0 0.0
      %1171 = vmatpush1.msra.mxu0 %v981
      %1172 = vmatprep.subr.mxu0 0.0
      %1173 = vmatpush1.msra.mxu0 %v982
      %1174 = vmatprep.subr.mxu0 0.0
      %1175 = vmatpush1.msra.mxu0 %v983
      %1176 = vmatprep.subr.mxu0 0.0
      %1177 = vmatpush1.msra.mxu0 %v984
      %1178 = vmatprep.subr.mxu0 0.0
      %1179 = vmatpush1.msra.mxu0 %v985
      %1180 = vmatprep.subr.mxu0 0.0
      %1181 = vmatpush1.msra.mxu0 0.0
      %1182 = vmatprep.subr.mxu0 0.0
      %1183 = vmatpush1.msra.mxu0 0.0
      %1184 = vmatprep.subr.mxu0 0.0
      %1185 = vmatpush1.msra.mxu0 0.0
      %1186 = vmatprep.subr.mxu0 0.0
      %1187 = vmatpush1.msra.mxu0 0.0
      %1188 = vmatprep.subr.mxu0 0.0
      %1189 = vmatpush1.msra.mxu0 0.0
      %1190 = vmatprep.subr.mxu0 0.0
      %1191 = vmatpush1.msra.mxu0 0.0
      %1192 = vmatprep.subr.mxu0 0.0
      %1193 = vmatpush1.msra.mxu0 0.0
      %1194 = vmatprep.subr.mxu0 0.0
      %1195 = vmatpush1.msra.mxu0 0.0
      %1196 = vmatprep.subr.mxu0 0.0
      %1197 = vmatpush1.msra.mxu0 0.0
      %1198 = vmatprep.subr.mxu0 0.0
      %1199 = vmatpush1.msra.mxu0 0.0
      %1200 = vmatprep.subr.mxu0 0.0
      %1201 = vmatpush1.msra.mxu0 0.0
      %1202 = vmatprep.subr.mxu0 0.0
      %1203 = vmatpush1.msra.mxu0 0.0
      %1204 = vmatprep.subr.mxu0 0.0
      %1205 = vmatpush1.msra.mxu0 0.0
      %1206 = vmatprep.subr.mxu0 0.0
      %1207 = vmatpush1.msra.mxu0 0.0
      %1208 = vmatprep.subr.mxu0 0.0
      %1209 = vmatpush1.msra.mxu0 0.0
      %1210 = vmatprep.subr.mxu0 0.0
      %1211 = vmatpush1.msra.mxu0 0.0
      %1212 = vmatprep.mubr.f32.mxu0 0.0
      %1213 = vmatmul.mubr.f32.gmra.mrb[0].mxu0 %v891
      %v1214 = vpop.f32.mrb[0].mxu0
      %v1215 = vadd.f32 %v1070, %v1214
      %v1216 = vpop.f32.mrb[0].mxu0
      %1217 = vmatprep.mubr.f32.mxu0 0.0
      %1218 = vmatmul.mubr.f32.gmra.mrb[0].mxu0 %v896
      %v1219 = vpop.f32.mrb[0].mxu0
      %v1220 = vadd.f32 %v1075, %v1219
      %v1221 = vpop.f32.mrb[0].mxu0
      %1222 = vmatprep.mubr.f32.mxu0 0.0
      %1223 = vmatmul.mubr.f32.gmra.mrb[0].mxu0 %v901
      %v1224 = vpop.f32.mrb[0].mxu0
      %v1225 = vadd.f32 %v1080, %v1224
      %v1226 = vpop.f32.mrb[0].mxu0
      %1227 = vmatprep.mubr.f32.mxu0 0.0
      %1228 = vmatmul.mubr.f32.gmra.mrb[0].mxu0 %v906
      %v1229 = vpop.f32.mrb[0].mxu0
      %v1230 = vadd.f32 %v1085, %v1229
      %v1231 = vpop.f32.mrb[0].mxu0
      %1232 = vmatprep.mubr.f32.mxu0 0.0
      %1233 = vmatmul.mubr.f32.gmra.mrb[0].mxu0 %v911
      %v1234 = vpop.f32.mrb[0].mxu0
      %v1235 = vadd.f32 %v1090, %v1234
      %v1236 = vpop.f32.mrb[0].mxu0
      %1237 = vmatprep.mubr.f32.mxu0 0.0
      %1238 = vmatmul.mubr.f32.gmra.mrb[0].mxu0 %v916
      %v1239 = vpop.f32.mrb[0].mxu0
      %v1240 = vadd.f32 %v1095, %v1239
      %v1241 = vpop.f32.mrb[0].mxu0
      %1242 = vmatprep.mubr.f32.mxu0 0.0
      %1243 = vmatmul.mubr.f32.gmra.mrb[0].mxu0 %v921
      %v1244 = vpop.f32.mrb[0].mxu0
      %v1245 = vadd.f32 %v1100, %v1244
      %v1246 = vpop.f32.mrb[0].mxu0
      %1247 = vmatprep.mubr.f32.mxu0 0.0
      %1248 = vmatmul.mubr.f32.gmra.mrb[0].mxu0 %v926
      %v1249 = vpop.f32.mrb[0].mxu0
      %v1250 = vadd.f32 %v1105, %v1249
      %v1251 = vpop.f32.mrb[0].mxu0
      %1252 = vmatprep.mubr.f32.mxu0 0.0
      %1253 = vmatmul.mubr.f32.gmra.mrb[0].mxu0 %v931
      %v1254 = vpop.f32.mrb[0].mxu0
      %v1255 = vadd.f32 %v1110, %v1254
      %v1256 = vpop.f32.mrb[0].mxu0
      %1257 = vmatprep.mubr.f32.mxu0 0.0
      %1258 = vmatmul.mubr.f32.gmra.mrb[0].mxu0 %v936
      %v1259 = vpop.f32.mrb[0].mxu0
      %v1260 = vadd.f32 %v1115, %v1259
      %v1261 = vpop.f32.mrb[0].mxu0
      %1262 = vmatprep.mubr.f32.mxu0 0.0
      %1263 = vmatmul.mubr.f32.gmra.mrb[0].mxu0 %v941
      %v1264 = vpop.f32.mrb[0].mxu0
      %v1265 = vadd.f32 %v1120, %v1264
      %v1266 = vpop.f32.mrb[0].mxu0
      %1267 = vmatprep.mubr.f32.mxu0 0.0
      %1268 = vmatmul.mubr.f32.gmra.mrb[0].mxu0 %v946
      %v1269 = vpop.f32.mrb[0].mxu0
      %v1270 = vadd.f32 %v1125, %v1269
      %v1271 = vpop.f32.mrb[0].mxu0
      %1272 = vmatprep.mubr.f32.mxu0 0.0
      %1273 = vmatmul.mubr.f32.gmra.mrb[0].mxu0 %v951
      %v1274 = vpop.f32.mrb[0].mxu0
      %v1275 = vadd.f32 %v1130, %v1274
      %v1276 = vpop.f32.mrb[0].mxu0
      %1277 = vmatprep.mubr.f32.mxu0 0.0
      %1278 = vmatmul.mubr.f32.gmra.mrb[0].mxu0 %v956
      %v1279 = vpop.f32.mrb[0].mxu0
      %v1280 = vadd.f32 %v1135, %v1279
      %v1281 = vpop.f32.mrb[0].mxu0
      %1282 = vmatprep.mubr.f32.mxu0 0.0
      %1283 = vmatmul.mubr.f32.gmra.mrb[0].mxu0 %v961
      %v1284 = vpop.f32.mrb[0].mxu0
      %v1285 = vadd.f32 %v1140, %v1284
      %v1286 = vpop.f32.mrb[0].mxu0
      %1287 = vmatprep.mubr.f32.mxu0 0.0
      %1288 = vmatmul.mubr.f32.gmra.mrb[0].mxu0 %v966
      %v1289 = vpop.f32.mrb[0].mxu0
      %v1290 = vadd.f32 %v1145, %v1289
      %v1291 = vpop.f32.mrb[0].mxu0
      %1292 = vdwg.mxu0
      %v1293 = vlaneseq
      %v1294 = vshrl.u32 %v1293, 7
      %v1295 = vsub.s32 1, %v1294
      %v1296 = vrot.slane %v303, %v1295
      %v1297 = vadd.f32 %v1215, %v1296
      %v1298 = vadd.f32 %v1220, %v1296
      %v1299 = vadd.f32 %v1225, %v1296
      %v1300 = vadd.f32 %v1230, %v1296
      %v1301 = vadd.f32 %v1235, %v1296
      %v1302 = vadd.f32 %v1240, %v1296
      %v1303 = vadd.f32 %v1245, %v1296
      %v1304 = vadd.f32 %v1250, %v1296
      %v1305 = vadd.f32 %v1255, %v1296
      %v1306 = vadd.f32 %v1260, %v1296
      %v1307 = vadd.f32 %v1265, %v1296
      %v1308 = vadd.f32 %v1270, %v1296
      %v1309 = vadd.f32 %v1275, %v1296
      %v1310 = vadd.f32 %v1280, %v1296
      %v1311 = vadd.f32 %v1285, %v1296
      %v1312 = vadd.f32 %v1290, %v1296
      %v1313 = vmax.f32 %v1297, 0.0
      %v1314 = vmax.f32 %v1298, 0.0
      %v1315 = vmax.f32 %v1299, 0.0
      %v1316 = vmax.f32 %v1300, 0.0
      %v1317 = vmax.f32 %v1301, 0.0
      %v1318 = vmax.f32 %v1302, 0.0
      %v1319 = vmax.f32 %v1303, 0.0
      %v1320 = vmax.f32 %v1304, 0.0
      %v1321 = vmax.f32 %v1305, 0.0
      %v1322 = vmax.f32 %v1306, 0.0
      %v1323 = vmax.f32 %v1307, 0.0
      %v1324 = vmax.f32 %v1308, 0.0
      %v1325 = vmax.f32 %v1309, 0.0
      %v1326 = vmax.f32 %v1310, 0.0
      %v1327 = vmax.f32 %v1311, 0.0
      %v1328 = vmax.f32 %v1312, 0.0
      %1329 = vmatprep.subr.mxu0 0.0
      %1330 = vmatpush1.msra.mxu0 %v1313
      %1331 = vmatprep.subr.mxu0 0.0
      %1332 = vmatpush1.msra.mxu0 %v1314
      %1333 = vmatprep.subr.mxu0 0.0
      %1334 = vmatpush1.msra.mxu0 %v1315
      %1335 = vmatprep.subr.mxu0 0.0
      %1336 = vmatpush1.msra.mxu0 %v1316
      %1337 = vmatprep.subr.mxu0 0.0
      %1338 = vmatpush1.msra.mxu0 %v1317
      %1339 = vmatprep.subr.mxu0 0.0
      %1340 = vmatpush1.msra.mxu0 %v1318
      %1341 = vmatprep.subr.mxu0 0.0
      %1342 = vmatpush1.msra.mxu0 %v1319
      %1343 = vmatprep.subr.mxu0 0.0
      %1344 = vmatpush1.msra.mxu0 %v1320
      %1345 = vmatprep.subr.mxu0 0.0
      %1346 = vmatpush1.msra.mxu0 %v1321
      %1347 = vmatprep.subr.mxu0 0.0
      %1348 = vmatpush1.msra.mxu0 %v1322
      %1349 = vmatprep.subr.mxu0 0.0
      %1350 = vmatpush1.msra.mxu0 %v1323
      %1351 = vmatprep.subr.mxu0 0.0
      %1352 = vmatpush1.msra.mxu0 %v1324
      %1353 = vmatprep.subr.mxu0 0.0
      %1354 = vmatpush1.msra.mxu0 %v1325
      %1355 = vmatprep.subr.mxu0 0.0
      %1356 = vmatpush1.msra.mxu0 %v1326
      %1357 = vmatprep.subr.mxu0 0.0
      %1358 = vmatpush1.msra.mxu0 %v1327
      %1359 = vmatprep.subr.mxu0 0.0
      %1360 = vmatpush1.msra.mxu0 %v1328
      %1361 = vmatprep.subr.mxu0 0.0
      %1362 = vmatpush1.msra.mxu0 0.0
      %1363 = vmatprep.subr.mxu0 0.0
      %1364 = vmatpush1.msra.mxu0 0.0
      %1365 = vmatprep.subr.mxu0 0.0
      %1366 = vmatpush1.msra.mxu0 0.0
      %1367 = vmatprep.subr.mxu0 0.0
      %1368 = vmatpush1.msra.mxu0 0.0
      %1369 = vmatprep.subr.mxu0 0.0
      %1370 = vmatpush1.msra.mxu0 0.0
      %1371 = vmatprep.subr.mxu0 0.0
      %1372 = vmatpush1.msra.mxu0 0.0
      %1373 = vmatprep.subr.mxu0 0.0
      %1374 = vmatpush1.msra.mxu0 0.0
      %1375 = vmatprep.subr.mxu0 0.0
      %1376 = vmatpush1.msra.mxu0 0.0
      %1377 = vmatprep.subr.mxu0 0.0
      %1378 = vmatpush1.msra.mxu0 0.0
      %1379 = vmatprep.subr.mxu0 0.0
      %1380 = vmatpush1.msra.mxu0 0.0
      %1381 = vmatprep.subr.mxu0 0.0
      %1382 = vmatpush1.msra.mxu0 0.0
      %1383 = vmatprep.subr.mxu0 0.0
      %1384 = vmatpush1.msra.mxu0 0.0
      %1385 = vmatprep.subr.mxu0 0.0
      %1386 = vmatpush1.msra.mxu0 0.0
      %1387 = vmatprep.subr.mxu0 0.0
      %1388 = vmatpush1.msra.mxu0 0.0
      %1389 = vmatprep.subr.mxu0 0.0
      %1390 = vmatpush1.msra.mxu0 0.0
      %1391 = vmatprep.subr.mxu0 0.0
      %1392 = vmatpush1.msra.mxu0 0.0
      %1393 = vmatprep.mubr.f32.mxu0 0.0
      %1394 = vmatmul.mubr.f32.gmra.mrb[0].mxu0 %v287
      %v1395 = vpop.f32.mrb[0].mxu0
      %v1396 = vadd.f32 0.0, %v1395
      %v1397 = vpop.f32.mrb[0].mxu0
      %1398 = vmatprep.mubr.f32.mxu0 0.0
      %1399 = vmatmul.mubr.f32.gmra.mrb[0].mxu0 %v288
      %v1400 = vpop.f32.mrb[0].mxu0
      %v1401 = vadd.f32 0.0, %v1400
      %v1402 = vpop.f32.mrb[0].mxu0
      %1403 = vmatprep.mubr.f32.mxu0 0.0
      %1404 = vmatmul.mubr.f32.gmra.mrb[0].mxu0 %v289
      %v1405 = vpop.f32.mrb[0].mxu0
      %v1406 = vadd.f32 0.0, %v1405
      %v1407 = vpop.f32.mrb[0].mxu0
      %1408 = vmatprep.mubr.f32.mxu0 0.0
      %1409 = vmatmul.mubr.f32.gmra.mrb[0].mxu0 %v290
      %v1410 = vpop.f32.mrb[0].mxu0
      %v1411 = vadd.f32 0.0, %v1410
      %v1412 = vpop.f32.mrb[0].mxu0
      %1413 = vmatprep.mubr.f32.mxu0 0.0
      %1414 = vmatmul.mubr.f32.gmra.mrb[0].mxu0 %v291
      %v1415 = vpop.f32.mrb[0].mxu0
      %v1416 = vadd.f32 0.0, %v1415
      %v1417 = vpop.f32.mrb[0].mxu0
      %1418 = vmatprep.mubr.f32.mxu0 0.0
      %1419 = vmatmul.mubr.f32.gmra.mrb[0].mxu0 %v292
      %v1420 = vpop.f32.mrb[0].mxu0
      %v1421 = vadd.f32 0.0, %v1420
      %v1422 = vpop.f32.mrb[0].mxu0
      %1423 = vmatprep.mubr.f32.mxu0 0.0
      %1424 = vmatmul.mubr.f32.gmra.mrb[0].mxu0 %v293
      %v1425 = vpop.f32.mrb[0].mxu0
      %v1426 = vadd.f32 0.0, %v1425
      %v1427 = vpop.f32.mrb[0].mxu0
      %1428 = vmatprep.mubr.f32.mxu0 0.0
      %1429 = vmatmul.mubr.f32.gmra.mrb[0].mxu0 %v294
      %v1430 = vpop.f32.mrb[0].mxu0
      %v1431 = vadd.f32 0.0, %v1430
      %v1432 = vpop.f32.mrb[0].mxu0
      %1433 = vmatprep.mubr.f32.mxu0 0.0
      %1434 = vmatmul.mubr.f32.gmra.mrb[0].mxu0 %v295
      %v1435 = vpop.f32.mrb[0].mxu0
      %v1436 = vadd.f32 0.0, %v1435
      %v1437 = vpop.f32.mrb[0].mxu0
      %1438 = vmatprep.mubr.f32.mxu0 0.0
      %1439 = vmatmul.mubr.f32.gmra.mrb[0].mxu0 %v296
      %v1440 = vpop.f32.mrb[0].mxu0
      %v1441 = vadd.f32 0.0, %v1440
      %v1442 = vpop.f32.mrb[0].mxu0
      %1443 = vmatprep.mubr.f32.mxu0 0.0
      %1444 = vmatmul.mubr.f32.gmra.mrb[0].mxu0 %v297
      %v1445 = vpop.f32.mrb[0].mxu0
      %v1446 = vadd.f32 0.0, %v1445
      %v1447 = vpop.f32.mrb[0].mxu0
      %1448 = vmatprep.mubr.f32.mxu0 0.0
      %1449 = vmatmul.mubr.f32.gmra.mrb[0].mxu0 %v298
      %v1450 = vpop.f32.mrb[0].mxu0
      %v1451 = vadd.f32 0.0, %v1450
      %v1452 = vpop.f32.mrb[0].mxu0
      %1453 = vmatprep.mubr.f32.mxu0 0.0
      %1454 = vmatmul.mubr.f32.gmra.mrb[0].mxu0 %v299
      %v1455 = vpop.f32.mrb[0].mxu0
      %v1456 = vadd.f32 0.0, %v1455
      %v1457 = vpop.f32.mrb[0].mxu0
      %1458 = vmatprep.mubr.f32.mxu0 0.0
      %1459 = vmatmul.mubr.f32.gmra.mrb[0].mxu0 %v300
      %v1460 = vpop.f32.mrb[0].mxu0
      %v1461 = vadd.f32 0.0, %v1460
      %v1462 = vpop.f32.mrb[0].mxu0
      %1463 = vmatprep.mubr.f32.mxu0 0.0
      %1464 = vmatmul.mubr.f32.gmra.mrb[0].mxu0 %v301
      %v1465 = vpop.f32.mrb[0].mxu0
      %v1466 = vadd.f32 0.0, %v1465
      %v1467 = vpop.f32.mrb[0].mxu0
      %1468 = vmatprep.mubr.f32.mxu0 0.0
      %1469 = vmatmul.mubr.f32.gmra.mrb[0].mxu0 %v302
      %v1470 = vpop.f32.mrb[0].mxu0
      %v1471 = vadd.f32 0.0, %v1470
      %v1472 = vpop.f32.mrb[0].mxu0
      %1473 = vdwg.mxu0
      %s1474 = scalar_lea.vmem %s3, 512
      %v1475 = vld [vmem:[%s1474] sm:$0xff]
      %v1476 = vld [vmem:[%s1474 + $0x8] sm:$0xff]
      %v1477 = vld [vmem:[%s1474 + $0x10] sm:$0xff]
      %v1478 = vld [vmem:[%s1474 + $0x18] sm:$0xff]
      %v1479 = vld [vmem:[%s1474 + $0x20] sm:$0xff]
      %v1480 = vld [vmem:[%s1474 + $0x28] sm:$0xff]
      %v1481 = vld [vmem:[%s1474 + $0x30] sm:$0xff]
      %v1482 = vld [vmem:[%s1474 + $0x38] sm:$0xff]
      %v1483 = vld [vmem:[%s1474 + $0x40] sm:$0xff]
      %v1484 = vld [vmem:[%s1474 + $0x48] sm:$0xff]
      %v1485 = vld [vmem:[%s1474 + $0x50] sm:$0xff]
      %v1486 = vld [vmem:[%s1474 + $0x58] sm:$0xff]
      %v1487 = vld [vmem:[%s1474 + $0x60] sm:$0xff]
      %v1488 = vld [vmem:[%s1474 + $0x68] sm:$0xff]
      %v1489 = vld [vmem:[%s1474 + $0x70] sm:$0xff]
      %v1490 = vld [vmem:[%s1474 + $0x78] sm:$0xff]
      %s1491 = scalar_lea.vmem %s3, 640
      %v1492 = vld [vmem:[%s1491] sm:$0xff]
      %v1493 = vld [vmem:[%s1491 + $0x8] sm:$0xff]
      %v1494 = vld [vmem:[%s1491 + $0x10] sm:$0xff]
      %v1495 = vld [vmem:[%s1491 + $0x18] sm:$0xff]
      %v1496 = vld [vmem:[%s1491 + $0x20] sm:$0xff]
      %v1497 = vld [vmem:[%s1491 + $0x28] sm:$0xff]
      %v1498 = vld [vmem:[%s1491 + $0x30] sm:$0xff]
      %v1499 = vld [vmem:[%s1491 + $0x38] sm:$0xff]
      %v1500 = vld [vmem:[%s1491 + $0x40] sm:$0xff]
      %v1501 = vld [vmem:[%s1491 + $0x48] sm:$0xff]
      %v1502 = vld [vmem:[%s1491 + $0x50] sm:$0xff]
      %v1503 = vld [vmem:[%s1491 + $0x58] sm:$0xff]
      %v1504 = vld [vmem:[%s1491 + $0x60] sm:$0xff]
      %v1505 = vld [vmem:[%s1491 + $0x68] sm:$0xff]
      %v1506 = vld [vmem:[%s1491 + $0x70] sm:$0xff]
      %v1507 = vld [vmem:[%s1491 + $0x78] sm:$0xff]
      %1508 = vmatprep.subr.mxu0 0.0
      %1509 = vmatpush1.msra.mxu0 %v1492
      %1510 = vmatprep.subr.mxu0 0.0
      %1511 = vmatpush1.msra.mxu0 %v1493
      %1512 = vmatprep.subr.mxu0 0.0
      %1513 = vmatpush1.msra.mxu0 %v1494
      %1514 = vmatprep.subr.mxu0 0.0
      %1515 = vmatpush1.msra.mxu0 %v1495
      %1516 = vmatprep.subr.mxu0 0.0
      %1517 = vmatpush1.msra.mxu0 %v1496
      %1518 = vmatprep.subr.mxu0 0.0
      %1519 = vmatpush1.msra.mxu0 %v1497
      %1520 = vmatprep.subr.mxu0 0.0
      %1521 = vmatpush1.msra.mxu0 %v1498
      %1522 = vmatprep.subr.mxu0 0.0
      %1523 = vmatpush1.msra.mxu0 %v1499
      %1524 = vmatprep.subr.mxu0 0.0
      %1525 = vmatpush1.msra.mxu0 %v1500
      %1526 = vmatprep.subr.mxu0 0.0
      %1527 = vmatpush1.msra.mxu0 %v1501
      %1528 = vmatprep.subr.mxu0 0.0
      %1529 = vmatpush1.msra.mxu0 %v1502
      %1530 = vmatprep.subr.mxu0 0.0
      %1531 = vmatpush1.msra.mxu0 %v1503
      %1532 = vmatprep.subr.mxu0 0.0
      %1533 = vmatpush1.msra.mxu0 %v1504
      %1534 = vmatprep.subr.mxu0 0.0
      %1535 = vmatpush1.msra.mxu0 %v1505
      %1536 = vmatprep.subr.mxu0 0.0
      %1537 = vmatpush1.msra.mxu0 %v1506
      %1538 = vmatprep.subr.mxu0 0.0
      %1539 = vmatpush1.msra.mxu0 %v1507
      %1540 = vmatprep.subr.mxu0 0.0
      %1541 = vmatpush1.msra.mxu0 0.0
      %1542 = vmatprep.subr.mxu0 0.0
      %1543 = vmatpush1.msra.mxu0 0.0
      %1544 = vmatprep.subr.mxu0 0.0
      %1545 = vmatpush1.msra.mxu0 0.0
      %1546 = vmatprep.subr.mxu0 0.0
      %1547 = vmatpush1.msra.mxu0 0.0
      %1548 = vmatprep.subr.mxu0 0.0
      %1549 = vmatpush1.msra.mxu0 0.0
      %1550 = vmatprep.subr.mxu0 0.0
      %1551 = vmatpush1.msra.mxu0 0.0
      %1552 = vmatprep.subr.mxu0 0.0
      %1553 = vmatpush1.msra.mxu0 0.0
      %1554 = vmatprep.subr.mxu0 0.0
      %1555 = vmatpush1.msra.mxu0 0.0
      %1556 = vmatprep.subr.mxu0 0.0
      %1557 = vmatpush1.msra.mxu0 0.0
      %1558 = vmatprep.subr.mxu0 0.0
      %1559 = vmatpush1.msra.mxu0 0.0
      %1560 = vmatprep.subr.mxu0 0.0
      %1561 = vmatpush1.msra.mxu0 0.0
      %1562 = vmatprep.subr.mxu0 0.0
      %1563 = vmatpush1.msra.mxu0 0.0
      %1564 = vmatprep.subr.mxu0 0.0
      %1565 = vmatpush1.msra.mxu0 0.0
      %1566 = vmatprep.subr.mxu0 0.0
      %1567 = vmatpush1.msra.mxu0 0.0
      %1568 = vmatprep.subr.mxu0 0.0
      %1569 = vmatpush1.msra.mxu0 0.0
      %1570 = vmatprep.subr.mxu0 0.0
      %1571 = vmatpush1.msra.mxu0 0.0
      %1572 = vmatprep.mubr.f32.mxu0 0.0
      %1573 = vmatmul.mubr.f32.gmra.mrb[0].mxu0 %v1313
      %v1574 = vpop.f32.mrb[0].mxu0
      %v1575 = vadd.f32 0.0, %v1574
      %v1576 = vpop.f32.mrb[0].mxu0
      %1577 = vmatprep.mubr.f32.mxu0 0.0
      %1578 = vmatmul.mubr.f32.gmra.mrb[0].mxu0 %v1314
      %v1579 = vpop.f32.mrb[0].mxu0
      %v1580 = vadd.f32 0.0, %v1579
      %v1581 = vpop.f32.mrb[0].mxu0
      %1582 = vmatprep.mubr.f32.mxu0 0.0
      %1583 = vmatmul.mubr.f32.gmra.mrb[0].mxu0 %v1315
      %v1584 = vpop.f32.mrb[0].mxu0
      %v1585 = vadd.f32 0.0, %v1584
      %v1586 = vpop.f32.mrb[0].mxu0
      %1587 = vmatprep.mubr.f32.mxu0 0.0
      %1588 = vmatmul.mubr.f32.gmra.mrb[0].mxu0 %v1316
      %v1589 = vpop.f32.mrb[0].mxu0
      %v1590 = vadd.f32 0.0, %v1589
      %v1591 = vpop.f32.mrb[0].mxu0
      %1592 = vmatprep.mubr.f32.mxu0 0.0
      %1593 = vmatmul.mubr.f32.gmra.mrb[0].mxu0 %v1317
      %v1594 = vpop.f32.mrb[0].mxu0
      %v1595 = vadd.f32 0.0, %v1594
      %v1596 = vpop.f32.mrb[0].mxu0
      %1597 = vmatprep.mubr.f32.mxu0 0.0
      %1598 = vmatmul.mubr.f32.gmra.mrb[0].mxu0 %v1318
      %v1599 = vpop.f32.mrb[0].mxu0
      %v1600 = vadd.f32 0.0, %v1599
      %v1601 = vpop.f32.mrb[0].mxu0
      %1602 = vmatprep.mubr.f32.mxu0 0.0
      %1603 = vmatmul.mubr.f32.gmra.mrb[0].mxu0 %v1319
      %v1604 = vpop.f32.mrb[0].mxu0
      %v1605 = vadd.f32 0.0, %v1604
      %v1606 = vpop.f32.mrb[0].mxu0
      %1607 = vmatprep.mubr.f32.mxu0 0.0
      %1608 = vmatmul.mubr.f32.gmra.mrb[0].mxu0 %v1320
      %v1609 = vpop.f32.mrb[0].mxu0
      %v1610 = vadd.f32 0.0, %v1609
      %v1611 = vpop.f32.mrb[0].mxu0
      %1612 = vmatprep.mubr.f32.mxu0 0.0
      %1613 = vmatmul.mubr.f32.gmra.mrb[0].mxu0 %v1321
      %v1614 = vpop.f32.mrb[0].mxu0
      %v1615 = vadd.f32 0.0, %v1614
      %v1616 = vpop.f32.mrb[0].mxu0
      %1617 = vmatprep.mubr.f32.mxu0 0.0
      %1618 = vmatmul.mubr.f32.gmra.mrb[0].mxu0 %v1322
      %v1619 = vpop.f32.mrb[0].mxu0
      %v1620 = vadd.f32 0.0, %v1619
      %v1621 = vpop.f32.mrb[0].mxu0
      %1622 = vmatprep.mubr.f32.mxu0 0.0
      %1623 = vmatmul.mubr.f32.gmra.mrb[0].mxu0 %v1323
      %v1624 = vpop.f32.mrb[0].mxu0
      %v1625 = vadd.f32 0.0, %v1624
      %v1626 = vpop.f32.mrb[0].mxu0
      %1627 = vmatprep.mubr.f32.mxu0 0.0
      %1628 = vmatmul.mubr.f32.gmra.mrb[0].mxu0 %v1324
      %v1629 = vpop.f32.mrb[0].mxu0
      %v1630 = vadd.f32 0.0, %v1629
      %v1631 = vpop.f32.mrb[0].mxu0
      %1632 = vmatprep.mubr.f32.mxu0 0.0
      %1633 = vmatmul.mubr.f32.gmra.mrb[0].mxu0 %v1325
      %v1634 = vpop.f32.mrb[0].mxu0
      %v1635 = vadd.f32 0.0, %v1634
      %v1636 = vpop.f32.mrb[0].mxu0
      %1637 = vmatprep.mubr.f32.mxu0 0.0
      %1638 = vmatmul.mubr.f32.gmra.mrb[0].mxu0 %v1326
      %v1639 = vpop.f32.mrb[0].mxu0
      %v1640 = vadd.f32 0.0, %v1639
      %v1641 = vpop.f32.mrb[0].mxu0
      %1642 = vmatprep.mubr.f32.mxu0 0.0
      %1643 = vmatmul.mubr.f32.gmra.mrb[0].mxu0 %v1327
      %v1644 = vpop.f32.mrb[0].mxu0
      %v1645 = vadd.f32 0.0, %v1644
      %v1646 = vpop.f32.mrb[0].mxu0
      %1647 = vmatprep.mubr.f32.mxu0 0.0
      %1648 = vmatmul.mubr.f32.gmra.mrb[0].mxu0 %v1328
      %v1649 = vpop.f32.mrb[0].mxu0
      %v1650 = vadd.f32 0.0, %v1649
      %v1651 = vpop.f32.mrb[0].mxu0
      %1652 = vdwg.mxu0
      %1653 = vmatprep.subr.mxu0 0.0
      %1654 = vmatpush1.msra.mxu0 %v1475
      %1655 = vmatprep.subr.mxu0 0.0
      %1656 = vmatpush1.msra.mxu0 %v1476
      %1657 = vmatprep.subr.mxu0 0.0
      %1658 = vmatpush1.msra.mxu0 %v1477
      %1659 = vmatprep.subr.mxu0 0.0
      %1660 = vmatpush1.msra.mxu0 %v1478
      %1661 = vmatprep.subr.mxu0 0.0
      %1662 = vmatpush1.msra.mxu0 %v1479
      %1663 = vmatprep.subr.mxu0 0.0
      %1664 = vmatpush1.msra.mxu0 %v1480
      %1665 = vmatprep.subr.mxu0 0.0
      %1666 = vmatpush1.msra.mxu0 %v1481
      %1667 = vmatprep.subr.mxu0 0.0
      %1668 = vmatpush1.msra.mxu0 %v1482
      %1669 = vmatprep.subr.mxu0 0.0
      %1670 = vmatpush1.msra.mxu0 %v1483
      %1671 = vmatprep.subr.mxu0 0.0
      %1672 = vmatpush1.msra.mxu0 %v1484
      %1673 = vmatprep.subr.mxu0 0.0
      %1674 = vmatpush1.msra.mxu0 %v1485
      %1675 = vmatprep.subr.mxu0 0.0
      %1676 = vmatpush1.msra.mxu0 %v1486
      %1677 = vmatprep.subr.mxu0 0.0
      %1678 = vmatpush1.msra.mxu0 %v1487
      %1679 = vmatprep.subr.mxu0 0.0
      %1680 = vmatpush1.msra.mxu0 %v1488
      %1681 = vmatprep.subr.mxu0 0.0
      %1682 = vmatpush1.msra.mxu0 %v1489
      %1683 = vmatprep.subr.mxu0 0.0
      %1684 = vmatpush1.msra.mxu0 %v1490
      %1685 = vmatprep.subr.mxu0 0.0
      %1686 = vmatpush1.msra.mxu0 0.0
      %1687 = vmatprep.subr.mxu0 0.0
      %1688 = vmatpush1.msra.mxu0 0.0
      %1689 = vmatprep.subr.mxu0 0.0
      %1690 = vmatpush1.msra.mxu0 0.0
      %1691 = vmatprep.subr.mxu0 0.0
      %1692 = vmatpush1.msra.mxu0 0.0
      %1693 = vmatprep.subr.mxu0 0.0
      %1694 = vmatpush1.msra.mxu0 0.0
      %1695 = vmatprep.subr.mxu0 0.0
      %1696 = vmatpush1.msra.mxu0 0.0
      %1697 = vmatprep.subr.mxu0 0.0
      %1698 = vmatpush1.msra.mxu0 0.0
      %1699 = vmatprep.subr.mxu0 0.0
      %1700 = vmatpush1.msra.mxu0 0.0
      %1701 = vmatprep.subr.mxu0 0.0
      %1702 = vmatpush1.msra.mxu0 0.0
      %1703 = vmatprep.subr.mxu0 0.0
      %1704 = vmatpush1.msra.mxu0 0.0
      %1705 = vmatprep.subr.mxu0 0.0
      %1706 = vmatpush1.msra.mxu0 0.0
      %1707 = vmatprep.subr.mxu0 0.0
      %1708 = vmatpush1.msra.mxu0 0.0
      %1709 = vmatprep.subr.mxu0 0.0
      %1710 = vmatpush1.msra.mxu0 0.0
      %1711 = vmatprep.subr.mxu0 0.0
      %1712 = vmatpush1.msra.mxu0 0.0
      %1713 = vmatprep.subr.mxu0 0.0
      %1714 = vmatpush1.msra.mxu0 0.0
      %1715 = vmatprep.subr.mxu0 0.0
      %1716 = vmatpush1.msra.mxu0 0.0
      %1717 = vmatprep.mubr.f32.mxu0 0.0
      %1718 = vmatmul.mubr.f32.gmra.mrb[0].mxu0 %v1396
      %v1719 = vpop.f32.mrb[0].mxu0
      %v1720 = vadd.f32 %v1575, %v1719
      %v1721 = vpop.f32.mrb[0].mxu0
      %1722 = vmatprep.mubr.f32.mxu0 0.0
      %1723 = vmatmul.mubr.f32.gmra.mrb[0].mxu0 %v1401
      %v1724 = vpop.f32.mrb[0].mxu0
      %v1725 = vadd.f32 %v1580, %v1724
      %v1726 = vpop.f32.mrb[0].mxu0
      %1727 = vmatprep.mubr.f32.mxu0 0.0
      %1728 = vmatmul.mubr.f32.gmra.mrb[0].mxu0 %v1406
      %v1729 = vpop.f32.mrb[0].mxu0
      %v1730 = vadd.f32 %v1585, %v1729
      %v1731 = vpop.f32.mrb[0].mxu0
      %1732 = vmatprep.mubr.f32.mxu0 0.0
      %1733 = vmatmul.mubr.f32.gmra.mrb[0].mxu0 %v1411
      %v1734 = vpop.f32.mrb[0].mxu0
      %v1735 = vadd.f32 %v1590, %v1734
      %v1736 = vpop.f32.mrb[0].mxu0
      %1737 = vmatprep.mubr.f32.mxu0 0.0
      %1738 = vmatmul.mubr.f32.gmra.mrb[0].mxu0 %v1416
      %v1739 = vpop.f32.mrb[0].mxu0
      %v1740 = vadd.f32 %v1595, %v1739
      %v1741 = vpop.f32.mrb[0].mxu0
      %1742 = vmatprep.mubr.f32.mxu0 0.0
      %1743 = vmatmul.mubr.f32.gmra.mrb[0].mxu0 %v1421
      %v1744 = vpop.f32.mrb[0].mxu0
      %v1745 = vadd.f32 %v1600, %v1744
      %v1746 = vpop.f32.mrb[0].mxu0
      %1747 = vmatprep.mubr.f32.mxu0 0.0
      %1748 = vmatmul.mubr.f32.gmra.mrb[0].mxu0 %v1426
      %v1749 = vpop.f32.mrb[0].mxu0
      %v1750 = vadd.f32 %v1605, %v1749
      %v1751 = vpop.f32.mrb[0].mxu0
      %1752 = vmatprep.mubr.f32.mxu0 0.0
      %1753 = vmatmul.mubr.f32.gmra.mrb[0].mxu0 %v1431
      %v1754 = vpop.f32.mrb[0].mxu0
      %v1755 = vadd.f32 %v1610, %v1754
      %v1756 = vpop.f32.mrb[0].mxu0
      %1757 = vmatprep.mubr.f32.mxu0 0.0
      %1758 = vmatmul.mubr.f32.gmra.mrb[0].mxu0 %v1436
      %v1759 = vpop.f32.mrb[0].mxu0
      %v1760 = vadd.f32 %v1615, %v1759
      %v1761 = vpop.f32.mrb[0].mxu0
      %1762 = vmatprep.mubr.f32.mxu0 0.0
      %1763 = vmatmul.mubr.f32.gmra.mrb[0].mxu0 %v1441
      %v1764 = vpop.f32.mrb[0].mxu0
      %v1765 = vadd.f32 %v1620, %v1764
      %v1766 = vpop.f32.mrb[0].mxu0
      %1767 = vmatprep.mubr.f32.mxu0 0.0
      %1768 = vmatmul.mubr.f32.gmra.mrb[0].mxu0 %v1446
      %v1769 = vpop.f32.mrb[0].mxu0
      %v1770 = vadd.f32 %v1625, %v1769
      %v1771 = vpop.f32.mrb[0].mxu0
      %1772 = vmatprep.mubr.f32.mxu0 0.0
      %1773 = vmatmul.mubr.f32.gmra.mrb[0].mxu0 %v1451
      %v1774 = vpop.f32.mrb[0].mxu0
      %v1775 = vadd.f32 %v1630, %v1774
      %v1776 = vpop.f32.mrb[0].mxu0
      %1777 = vmatprep.mubr.f32.mxu0 0.0
      %1778 = vmatmul.mubr.f32.gmra.mrb[0].mxu0 %v1456
      %v1779 = vpop.f32.mrb[0].mxu0
      %v1780 = vadd.f32 %v1635, %v1779
      %v1781 = vpop.f32.mrb[0].mxu0
      %1782 = vmatprep.mubr.f32.mxu0 0.0
      %1783 = vmatmul.mubr.f32.gmra.mrb[0].mxu0 %v1461
      %v1784 = vpop.f32.mrb[0].mxu0
      %v1785 = vadd.f32 %v1640, %v1784
      %v1786 = vpop.f32.mrb[0].mxu0
      %1787 = vmatprep.mubr.f32.mxu0 0.0
      %1788 = vmatmul.mubr.f32.gmra.mrb[0].mxu0 %v1466
      %v1789 = vpop.f32.mrb[0].mxu0
      %v1790 = vadd.f32 %v1645, %v1789
      %v1791 = vpop.f32.mrb[0].mxu0
      %1792 = vmatprep.mubr.f32.mxu0 0.0
      %1793 = vmatmul.mubr.f32.gmra.mrb[0].mxu0 %v1471
      %v1794 = vpop.f32.mrb[0].mxu0
      %v1795 = vadd.f32 %v1650, %v1794
      %v1796 = vpop.f32.mrb[0].mxu0
      %1797 = vdwg.mxu0
      %v1798 = vlaneseq
      %v1799 = vshrl.u32 %v1798, 7
      %v1800 = vsub.s32 2, %v1799
      %v1801 = vrot.slane %v303, %v1800
      %v1802 = vadd.f32 %v1720, %v1801
      %v1803 = vadd.f32 %v1725, %v1801
      %v1804 = vadd.f32 %v1730, %v1801
      %v1805 = vadd.f32 %v1735, %v1801
      %v1806 = vadd.f32 %v1740, %v1801
      %v1807 = vadd.f32 %v1745, %v1801
      %v1808 = vadd.f32 %v1750, %v1801
      %v1809 = vadd.f32 %v1755, %v1801
      %v1810 = vadd.f32 %v1760, %v1801
      %v1811 = vadd.f32 %v1765, %v1801
      %v1812 = vadd.f32 %v1770, %v1801
      %v1813 = vadd.f32 %v1775, %v1801
      %v1814 = vadd.f32 %v1780, %v1801
      %v1815 = vadd.f32 %v1785, %v1801
      %v1816 = vadd.f32 %v1790, %v1801
      %v1817 = vadd.f32 %v1795, %v1801
      %v1818 = vld [vmem:[%s282] sm:$0xff]
      %1819 = vmatprep.subr.mxu0 0.0
      %1820 = vmatpush1.msra.mxu0 %v1802
      %1821 = vmatprep.subr.mxu0 0.0
      %1822 = vmatpush1.msra.mxu0 %v1803
      %1823 = vmatprep.subr.mxu0 0.0
      %1824 = vmatpush1.msra.mxu0 %v1804
      %1825 = vmatprep.subr.mxu0 0.0
      %1826 = vmatpush1.msra.mxu0 %v1805
      %1827 = vmatprep.subr.mxu0 0.0
      %1828 = vmatpush1.msra.mxu0 %v1806
      %1829 = vmatprep.subr.mxu0 0.0
      %1830 = vmatpush1.msra.mxu0 %v1807
      %1831 = vmatprep.subr.mxu0 0.0
      %1832 = vmatpush1.msra.mxu0 %v1808
      %1833 = vmatprep.subr.mxu0 0.0
      %1834 = vmatpush1.msra.mxu0 %v1809
      %1835 = vmatprep.subr.mxu0 0.0
      %1836 = vmatpush1.msra.mxu0 %v1810
      %1837 = vmatprep.subr.mxu0 0.0
      %1838 = vmatpush1.msra.mxu0 %v1811
      %1839 = vmatprep.subr.mxu0 0.0
      %1840 = vmatpush1.msra.mxu0 %v1812
      %1841 = vmatprep.subr.mxu0 0.0
      %1842 = vmatpush1.msra.mxu0 %v1813
      %1843 = vmatprep.subr.mxu0 0.0
      %1844 = vmatpush1.msra.mxu0 %v1814
      %1845 = vmatprep.subr.mxu0 0.0
      %1846 = vmatpush1.msra.mxu0 %v1815
      %1847 = vmatprep.subr.mxu0 0.0
      %1848 = vmatpush1.msra.mxu0 %v1816
      %1849 = vmatprep.subr.mxu0 0.0
      %1850 = vmatpush1.msra.mxu0 %v1817
      %1851 = vmatprep.subr.mxu0 0.0
      %1852 = vmatpush1.msra.mxu0 0.0
      %1853 = vmatprep.subr.mxu0 0.0
      %1854 = vmatpush1.msra.mxu0 0.0
      %1855 = vmatprep.subr.mxu0 0.0
      %1856 = vmatpush1.msra.mxu0 0.0
      %1857 = vmatprep.subr.mxu0 0.0
      %1858 = vmatpush1.msra.mxu0 0.0
      %1859 = vmatprep.subr.mxu0 0.0
      %1860 = vmatpush1.msra.mxu0 0.0
      %1861 = vmatprep.subr.mxu0 0.0
      %1862 = vmatpush1.msra.mxu0 0.0
      %1863 = vmatprep.subr.mxu0 0.0
      %1864 = vmatpush1.msra.mxu0 0.0
      %1865 = vmatprep.subr.mxu0 0.0
      %1866 = vmatpush1.msra.mxu0 0.0
      %1867 = vmatprep.subr.mxu0 0.0
      %1868 = vmatpush1.msra.mxu0 0.0
      %1869 = vmatprep.subr.mxu0 0.0
      %1870 = vmatpush1.msra.mxu0 0.0
      %1871 = vmatprep.subr.mxu0 0.0
      %1872 = vmatpush1.msra.mxu0 0.0
      %1873 = vmatprep.subr.mxu0 0.0
      %1874 = vmatpush1.msra.mxu0 0.0
      %1875 = vmatprep.subr.mxu0 0.0
      %1876 = vmatpush1.msra.mxu0 0.0
      %1877 = vmatprep.subr.mxu0 0.0
      %1878 = vmatpush1.msra.mxu0 0.0
      %1879 = vmatprep.subr.mxu0 0.0
      %1880 = vmatpush1.msra.mxu0 0.0
      %1881 = vmatprep.subr.mxu0 0.0
      %1882 = vmatpush1.msra.mxu0 0.0
      %1883 = vmatprep.mubr.f32.mxu0 0.0
      %1884 = vmatmul.mubr.f32.gmra.mrb[0].mxu0 %v1818
      %v1885 = vpop.f32.mrb[0].mxu0
      %v1886 = vadd.f32 0.0, %v1885
      %v1887 = vpop.f32.mrb[0].mxu0
      %1888 = vdwg.mxu0
      %v1889 = vld [vmem:[%s5] sm:$0xff]
      %v1890 = vld [vmem:[%s5 + $0x8] sm:$0xff]
      %v1891 = vld [vmem:[%s5 + $0x10] sm:$0xff]
      %v1892 = vld [vmem:[%s5 + $0x18] sm:$0xff]
      %v1893 = vld [vmem:[%s5 + $0x20] sm:$0xff]
      %v1894 = vld [vmem:[%s5 + $0x28] sm:$0xff]
      %v1895 = vld [vmem:[%s5 + $0x30] sm:$0xff]
      %v1896 = vld [vmem:[%s5 + $0x38] sm:$0xff]
      %v1897 = vld [vmem:[%s5 + $0x40] sm:$0xff]
      %v1898 = vld [vmem:[%s5 + $0x48] sm:$0xff]
      %v1899 = vld [vmem:[%s5 + $0x50] sm:$0xff]
      %v1900 = vld [vmem:[%s5 + $0x58] sm:$0xff]
      %v1901 = vld [vmem:[%s5 + $0x60] sm:$0xff]
      %v1902 = vld [vmem:[%s5 + $0x68] sm:$0xff]
      %v1903 = vld [vmem:[%s5 + $0x70] sm:$0xff]
      %v1904 = vld [vmem:[%s5 + $0x78] sm:$0xff]
      %v1905 = vlaneseq
      %v1906 = vshrl.u32 %v1905, 7
      %v1907 = vsub.s32 3, %v1906
      %v1908 = vrot.slane %v303, %v1907
      %1909 = vmatprep.subr.mxu0 0.0
      %1910 = vmatpush1.msra.mxu0 %v1889
      %1911 = vmatprep.subr.mxu0 0.0
      %1912 = vmatpush1.msra.mxu0 %v1890
      %1913 = vmatprep.subr.mxu0 0.0
      %1914 = vmatpush1.msra.mxu0 %v1891
      %1915 = vmatprep.subr.mxu0 0.0
      %1916 = vmatpush1.msra.mxu0 %v1892
      %1917 = vmatprep.subr.mxu0 0.0
      %1918 = vmatpush1.msra.mxu0 %v1893
      %1919 = vmatprep.subr.mxu0 0.0
      %1920 = vmatpush1.msra.mxu0 %v1894
      %1921 = vmatprep.subr.mxu0 0.0
      %1922 = vmatpush1.msra.mxu0 %v1895
      %1923 = vmatprep.subr.mxu0 0.0
      %1924 = vmatpush1.msra.mxu0 %v1896
      %1925 = vmatprep.subr.mxu0 0.0
      %1926 = vmatpush1.msra.mxu0 %v1897
      %1927 = vmatprep.subr.mxu0 0.0
      %1928 = vmatpush1.msra.mxu0 %v1898
      %1929 = vmatprep.subr.mxu0 0.0
      %1930 = vmatpush1.msra.mxu0 %v1899
      %1931 = vmatprep.subr.mxu0 0.0
      %1932 = vmatpush1.msra.mxu0 %v1900
      %1933 = vmatprep.subr.mxu0 0.0
      %1934 = vmatpush1.msra.mxu0 %v1901
      %1935 = vmatprep.subr.mxu0 0.0
      %1936 = vmatpush1.msra.mxu0 %v1902
      %1937 = vmatprep.subr.mxu0 0.0
      %1938 = vmatpush1.msra.mxu0 %v1903
      %1939 = vmatprep.subr.mxu0 0.0
      %1940 = vmatpush1.msra.mxu0 %v1904
      %1941 = vmatprep.subr.mxu0 0.0
      %1942 = vmatpush1.msra.mxu0 0.0
      %1943 = vmatprep.subr.mxu0 0.0
      %1944 = vmatpush1.msra.mxu0 0.0
      %1945 = vmatprep.subr.mxu0 0.0
      %1946 = vmatpush1.msra.mxu0 0.0
      %1947 = vmatprep.subr.mxu0 0.0
      %1948 = vmatpush1.msra.mxu0 0.0
      %1949 = vmatprep.subr.mxu0 0.0
      %1950 = vmatpush1.msra.mxu0 0.0
      %1951 = vmatprep.subr.mxu0 0.0
      %1952 = vmatpush1.msra.mxu0 0.0
      %1953 = vmatprep.subr.mxu0 0.0
      %1954 = vmatpush1.msra.mxu0 0.0
      %1955 = vmatprep.subr.mxu0 0.0
      %1956 = vmatpush1.msra.mxu0 0.0
      %1957 = vmatprep.subr.mxu0 0.0
      %1958 = vmatpush1.msra.mxu0 0.0
      %1959 = vmatprep.subr.mxu0 0.0
      %1960 = vmatpush1.msra.mxu0 0.0
      %1961 = vmatprep.subr.mxu0 0.0
      %1962 = vmatpush1.msra.mxu0 0.0
      %1963 = vmatprep.subr.mxu0 0.0
      %1964 = vmatpush1.msra.mxu0 0.0
      %1965 = vmatprep.subr.mxu0 0.0
      %1966 = vmatpush1.msra.mxu0 0.0
      %1967 = vmatprep.subr.mxu0 0.0
      %1968 = vmatpush1.msra.mxu0 0.0
      %1969 = vmatprep.subr.mxu0 0.0
      %1970 = vmatpush1.msra.mxu0 0.0
      %1971 = vmatprep.subr.mxu0 0.0
      %1972 = vmatpush1.msra.mxu0 0.0
      %1973 = vmatprep.mubr.f32.mxu0 0.0
      %1974 = vmatmul.mubr.f32.gmra.mrb[0].mxu0 %v1886
      %v1975 = vpop.f32.mrb[0].mxu0
      %v1976 = vadd.f32 %v1908, %v1975
      %v1977 = vpop.f32.mrb[0].mxu0
      %1978 = vdwg.mxu0
      %1979 = vst [vmem:[%s286] sm:$0xff] %v1976
      %p1980 = scmp.lt.s32.totalorder %s17, 7
      %s1981 = scalar_select %p1980, %s17, 7
      %s1982 = smul.addr %s1981, 8
      %s1983 = scalar_lea.vmem %s6, %s1982
      // Predicated region
      $region45: #{gcn_forward.1} parent=43 // pred_check
        %p1984 = pneg %p176
      $region46: #{gcn_forward.1} parent=43 // pred_check_branch
        %1986 = sbr.rel (%p1984) target = $region48
      $region47: #{gcn_forward.1} parent=43 // pred_region
        _
      $region48: #{gcn_forward.1} parent=43 // pred_fallthru
        _
    $region44: #{gcn_forward.1} parent=5 // pred_fallthru
      _
    %p1987 = scmp.le.s32.totalorder 2, %s12
    // Predicated region
    $region49: #{gcn_forward.1} parent=5 // pred_check
      %p1988 = pneg %p1987
    $region50: #{gcn_forward.1} parent=5 // pred_check_branch
      %1990 = sbr.rel (%p1988) target = $region52
    $region51: #{gcn_forward.1} parent=5 // pred_region
      %s1991 = ssub.s32 %s12, 2
      // Predicated region
      $region53: #{gcn_forward.1} parent=51 // pred_check
        %p1992 = pneg %p182
      $region54: #{gcn_forward.1} parent=51 // pred_check_branch
        %1994 = sbr.rel (%p1992) target = $region56
      $region55: #{gcn_forward.1} parent=51 // pred_region
        %p1995 = scmp.lt.s32.totalorder %s18, 7
        %s1996 = scalar_select %p1995, %s18, 7
        %s1997 = smul.addr %s1996, 8
        %s1998 = scalar_lea.vmem %s6, %s1997
      $region56: #{gcn_forward.1} parent=51 // pred_fallthru
        _
    $region52: #{gcn_forward.1} parent=5 // pred_fallthru
      _
  $region6: #{gcn_forward.1} parent=0 // loop_footer
    %s16 = sadd.s32 1, %s12
  $region7: #{gcn_forward.1} parent=0 // loop_footer_branch
    %11 = sbr.rel target = $region3
  $region8: #{gcn_forward.1} parent=0 // loop_exit
    _

</llo_original>
